<compile_context>
chip_gen: v5e
topology: v5e:2x2
jax: 0.10.0
libtpu: 0.0.40
codegen_flags: <defaults>
</compile_context>

<pallas_src>
import jax
import jax.numpy as jnp
from jax.experimental import pallas as pl
from jax.experimental.pallas import tpu as pltpu


# ------------------------- fused Pallas kernel -------------------------

def fused_bilstm_fc_kernel(x2d_ref, x_last_ref,
                           wih_f_ref, whh_f_ref, b_f_ref,
                           wih_b_ref, b_b_ref,
                           fcw_f_ref, fcw_b_ref, fcb_ref,
                           o_ref, gx_ref):
    """Whole model in one invocation.

    x2d_ref   : (T*B, I)  bf16, TIME-MAJOR rows (row index = t*B + b)
    x_last_ref: (B, I)    bf16, x[:, T-1, :] for the backward-direction step
    w*_ref    : bf16 pre-transposed weights, gates padded to Hp=ceil128(H)
    b*_ref    : f32 biases (added to the f32 accumulator)
    gx_ref    : VMEM scratch (T*B, 4*Hp) f32 — hoisted input projection
    o_ref     : (B, C) f32 logits
    """
    BT = x2d_ref.shape[0]
    B = x_last_ref.shape[0]
    T = BT // B
    Hp = whh_f_ref.shape[0]          # lane-padded hidden size (multiple of 128)

    def cell(gates, c_prev):
        # Gate slices at lane offsets 0/Hp/2Hp/3Hp (PyTorch order i|f|g|o);
        # Hp % 128 == 0 => whole-vreg slices, no lane relayout. All math in f32.
        i_g = jax.nn.sigmoid(gates[:, 0 * Hp:1 * Hp])
        f_g = jax.nn.sigmoid(gates[:, 1 * Hp:2 * Hp])
        g_g = jnp.tanh(gates[:, 2 * Hp:3 * Hp])
        o_g = jax.nn.sigmoid(gates[:, 3 * Hp:4 * Hp])
        c_new = f_g * c_prev + i_g * g_g
        h_new = o_g * jnp.tanh(c_new)
        return h_new, c_new

    # ---- hoisted input projection: ONE big bf16 MXU pass, f32 acc, bias folded ----
    gx_ref[...] = (jnp.dot(x2d_ref[...], wih_f_ref[...],
                           preferred_element_type=jnp.float32)
                   + b_f_ref[...])

    # ---- forward recurrence: serial over T, fully unrolled (T static & small) ----
    whh_f = whh_f_ref[...]                         # hoist weight load out of the loop
    h = jnp.zeros((B, Hp), jnp.float32)
    c = jnp.zeros((B, Hp), jnp.float32)
    for t in range(T):
        # time-major => rows [t*B, t*B+B) are a contiguous, sublane-aligned slab
        # (t*B is a static Python int, so this is a static aligned slice).
        g_x = gx_ref[pl.ds(t * B, B), :]
        gates = g_x + jnp.dot(h.astype(jnp.bfloat16), whh_f,
                              preferred_element_type=jnp.float32)
        h, c = cell(gates, c)
    h_fwd = h

    # ---- backward direction at output index T-1: one step from the zero state ----
    # Exact because the head uses out[:, -1, :] only (h0 = 0 => no W_hh_b term).
    gates_b = (jnp.dot(x_last_ref[...], wih_b_ref[...],
                       preferred_element_type=jnp.float32)
               + b_b_ref[...])
    h_bwd, _ = cell(gates_b, jnp.zeros((B, Hp), jnp.float32))

    # ---- eval-mode dropout = identity; fused classifier epilogue ----
    # out = [h_fwd | h_bwd] @ fc_w.T + fc_b, with fc_w pre-split (no concat).
    # Padded h lanes are exactly zero and fc rows there are zero => no leakage.
    o_ref[...] = (jnp.dot(h_fwd.astype(jnp.bfloat16), fcw_f_ref[...],
                          preferred_element_type=jnp.float32)
                  + jnp.dot(h_bwd.astype(jnp.bfloat16), fcw_b_ref[...],
                            preferred_element_type=jnp.float32)
                  + fcb_ref[...]).astype(o_ref.dtype)


# ------------------------- weight packing (one-time) -------------------------

def _ceil128(n):
    return ((n + 127) // 128) * 128


def _pad_gates_last(w, H, Hp):
    """(..., 4H) -> (..., 4Hp): zero-pad each PyTorch gate block (i|f|g|o) to Hp."""
    gates = jnp.split(w, 4, axis=-1)
    pad = [(0, 0)] * (w.ndim - 1) + [(0, Hp - H)]
    return jnp.concatenate([jnp.pad(g, pad) for g in gates], axis=-1)


def pack_params(p):
    """One-time packing from PyTorch layouts: transpose, pad gates to Hp=ceil128(H),
    cast matmul operands to bf16 (biases stay f32 — they add into the f32 acc)."""
    H = p["w_hh_f"].shape[1]
    Hp = _ceil128(H)
    bf16 = jnp.bfloat16
    f32 = jnp.float32

    def pack_wih(w):                                    # (4H, I) -> (I, 4Hp) bf16
        return _pad_gates_last(jnp.asarray(w, f32).T, H, Hp).astype(bf16)

    def pack_whh(w):                                    # (4H, H) -> (Hp, 4Hp) bf16
        wt = _pad_gates_last(jnp.asarray(w, f32).T, H, Hp)
        return jnp.pad(wt, ((0, Hp - H), (0, 0))).astype(bf16)

    def pack_bias(bi, bh):                              # (4H,) -> (1, 4Hp) f32
        return _pad_gates_last(jnp.asarray(bi + bh, f32)[None, :], H, Hp)

    def pack_fcw(w):                                    # (C, H) -> (Hp, C) bf16
        return jnp.pad(jnp.asarray(w, f32).T, ((0, Hp - H), (0, 0))).astype(bf16)

    return {
        "wih_f": pack_wih(p["w_ih_f"]),
        "whh_f": pack_whh(p["w_hh_f"]),
        "b_f":   pack_bias(p["b_ih_f"], p["b_hh_f"]),
        "wih_b": pack_wih(p["w_ih_b"]),
        "b_b":   pack_bias(p["b_ih_b"], p["b_hh_b"]),
        "fcw_f": pack_fcw(p["fc_w"][:, :H]),
        "fcw_b": pack_fcw(p["fc_w"][:, H:]),
        "fcb":   jnp.asarray(p["fc_b"], jnp.float32)[None, :],
    }


# ------------------------- forward wrapper -------------------------

@jax.jit
def lstm_model_forward(x, packed):
    """x: (B, T, I) batch-first, like the PyTorch module (eval mode)."""
    B, T, I = x.shape
    Hp = packed["whh_f"].shape[0]
    C = packed["fcb"].shape[-1]
    xf = jnp.asarray(x, jnp.float32)
    # Time-major rows (row index = t*B + b): per-step reads in the kernel become
    # contiguous aligned slabs. The transpose happens once in XLA (off the
    # kernel's serial critical path). Cast matmul operands to bf16 here.
    x_tm = jnp.swapaxes(xf, 0, 1).reshape(T * B, I).astype(jnp.bfloat16)
    x_last = xf[:, T - 1, :].astype(jnp.bfloat16)
    return pl.pallas_call(
        fused_bilstm_fc_kernel,
        out_shape=jax.ShapeDtypeStruct((B, C), jnp.float32),
        scratch_shapes=[pltpu.VMEM((T * B, 4 * Hp), jnp.float32)],
        # Explicit scoped-VMEM budget with headroom; 32 MiB is valid on
        # v5e/v6e/v7x and far above this toy footprint (~0.2 MiB).
        compiler_params=pltpu.CompilerParams(vmem_limit_bytes=32 * 1024 * 1024),
    )(x_tm, x_last,
      packed["wih_f"], packed["whh_f"], packed["b_f"],
      packed["wih_b"], packed["b_b"],
      packed["fcw_f"], packed["fcw_b"], packed["fcb"])


# ------------------------- pure-JAX reference -------------------------

def _lstm_ref_seq(x, w_ih, w_hh, b_ih, b_hh):
    B, T, I = x.shape
    H = w_hh.shape[1]

    def step(carry, x_t):
        h, c = carry
        gates = x_t @ w_ih.T + h @ w_hh.T + b_ih + b_hh
        i, f, g, o = jnp.split(gates, 4, axis=-1)
        i, f, g, o = jax.nn.sigmoid(i), jax.nn.sigmoid(f), jnp.tanh(g), jax.nn.sigmoid(o)
        c = f * c + i * g
        h = o * jnp.tanh(c)
        return (h, c), h

    init = (jnp.zeros((B, H), jnp.float32), jnp.zeros((B, H), jnp.float32))
    _, hs = jax.lax.scan(step, init, jnp.transpose(x, (1, 0, 2)))
    return jnp.transpose(hs, (1, 0, 2))                   # (B, T, H)


def model_ref(x, p):
    out_f = _lstm_ref_seq(x, p["w_ih_f"], p["w_hh_f"], p["b_ih_f"], p["b_hh_f"])
    out_b = _lstm_ref_seq(x[:, ::-1, :], p["w_ih_b"], p["w_hh_b"],
                          p["b_ih_b"], p["b_hh_b"])[:, ::-1, :]
    last = jnp.concatenate([out_f, out_b], axis=-1)[:, -1, :]
    return last @ p["fc_w"].T + p["fc_b"]


# ------------------------- parameter init (deterministic) -------------------------

def init_params(key, input_size, hidden_size, num_classes):
    ks = jax.random.split(key, 10)
    k_lstm = 1.0 / jnp.sqrt(hidden_size)
    k_fc = 1.0 / jnp.sqrt(2 * hidden_size)
    u = lambda k, shape, bound: jax.random.uniform(k, shape, jnp.float32, -bound, bound)
    H4 = 4 * hidden_size
    return {
        "w_ih_f": u(ks[0], (H4, input_size), k_lstm),
        "w_hh_f": u(ks[1], (H4, hidden_size), k_lstm),
        "b_ih_f": u(ks[2], (H4,), k_lstm),
        "b_hh_f": u(ks[3], (H4,), k_lstm),
        "w_ih_b": u(ks[4], (H4, input_size), k_lstm),
        "w_hh_b": u(ks[5], (H4, hidden_size), k_lstm),
        "b_ih_b": u(ks[6], (H4,), k_lstm),
        "b_hh_b": u(ks[7], (H4,), k_lstm),
        "fc_w": u(ks[8], (num_classes, 2 * hidden_size), k_fc),
        "fc_b": u(ks[9], (num_classes,), k_fc),
    }


# ------------------------- main -------------------------

if __name__ == "__main__":
    B, T, I, H, C = 8, 8, 16, 32, 2
    key = jax.random.PRNGKey(0)
    kx, kp = jax.random.split(key)
    x = jax.random.normal(kx, (B, T, I), jnp.float32)
    params = init_params(kp, I, H, C)

    packed = pack_params(params)                 # one-time weight packing
    out = jax.block_until_ready(lstm_model_forward(x, packed))
    assert out.shape == (B, C), out.shape

    # Check 1 (tight-ish): reference computed with identically bf16-rounded matmul
    # operands — isolates kernel/layout bugs from bf16 quantisation error.
    q = lambda a: jnp.asarray(a, jnp.bfloat16).astype(jnp.float32)
    params_q = {k: (q(v) if k.startswith(("w_", "fc_w")) else v)
                for k, v in params.items()}
    ref_q = jax.block_until_ready(model_ref(q(x), params_q))
    err_q = jnp.max(jnp.abs(out - ref_q))
    assert jnp.allclose(out, ref_q, atol=2e-2, rtol=2e-2), f"max abs err (bf16 ref) {err_q}"

    # Check 2 (loose): original full-f32 module semantics; tolerance reflects
    # bf16 MXU operands with f32 accumulation (typical error ~1e-2 at this scale).
    ref = jax.block_until_ready(model_ref(x, params))
    err = jnp.max(jnp.abs(out - ref))
    assert jnp.allclose(out, ref, atol=1e-1, rtol=1e-1), f"max abs err (f32 ref) {err}"

    print("KERNEL_OK")
</pallas_src>

<mosaic_0001>
module attributes {stable_mosaic.version = 11 : i64} {
  func.func @fused_bilstm_fc_kernel(%arg0: memref<64x16xbf16, #tpu.memory_space<vmem>>, %arg1: memref<8x16xbf16, #tpu.memory_space<vmem>>, %arg2: memref<16x512xbf16, #tpu.memory_space<vmem>>, %arg3: memref<128x512xbf16, #tpu.memory_space<vmem>>, %arg4: memref<1x512xf32, #tpu.memory_space<vmem>>, %arg5: memref<16x512xbf16, #tpu.memory_space<vmem>>, %arg6: memref<1x512xf32, #tpu.memory_space<vmem>>, %arg7: memref<128x2xbf16, #tpu.memory_space<vmem>>, %arg8: memref<128x2xbf16, #tpu.memory_space<vmem>>, %arg9: memref<1x2xf32, #tpu.memory_space<vmem>>, %arg10: memref<8x2xf32, #tpu.memory_space<vmem>>, %arg11: memref<64x512xf32, #tpu.memory_space<vmem>>) attributes {dimension_semantics = [], scalar_prefetch = 0 : i64, scratch_operands = 1 : i64, tpu.core_type = #tpu.core_type<tc>} {
    %c0 = arith.constant 0 : index
    %c0_0 = arith.constant 0 : index
    %0 = vector.load %arg0[%c0, %c0_0] : memref<64x16xbf16, #tpu.memory_space<vmem>>, vector<64x16xbf16>
    %c0_1 = arith.constant 0 : index
    %c0_2 = arith.constant 0 : index
    %1 = vector.load %arg2[%c0_1, %c0_2] : memref<16x512xbf16, #tpu.memory_space<vmem>>, vector<16x512xbf16>
    %cst = arith.constant dense<0.000000e+00> : vector<64x512xf32>
    %2 = tpu.matmul %0, %1, %cst {dimension_numbers = #tpu.dot_dimension_numbers<[1], [0], [0], [1], [0, 0, 1, 1], [], []>} : vector<64x16xbf16>, vector<16x512xbf16>, vector<64x512xf32> -> vector<64x512xf32>
    %c0_3 = arith.constant 0 : index
    %c0_4 = arith.constant 0 : index
    %3 = vector.load %arg4[%c0_3, %c0_4] : memref<1x512xf32, #tpu.memory_space<vmem>>, vector<1x512xf32>
    %4 = vector.broadcast %3 : vector<1x512xf32> to vector<64x512xf32>
    %5 = arith.addf %2, %4 : vector<64x512xf32>
    %c0_5 = arith.constant 0 : index
    %c0_6 = arith.constant 0 : index
    %6 = vector.load %arg11[%c0_5, %c0_6] : memref<64x512xf32, #tpu.memory_space<vmem>>, vector<64x512xf32>
    tpu.vector_store %arg11[%c0_5, %c0_6], %5 {strides = array<i32>} : memref<64x512xf32, #tpu.memory_space<vmem>>, vector<64x512xf32>,
    %c0_7 = arith.constant 0 : index
    %c0_8 = arith.constant 0 : index
    %7 = vector.load %arg3[%c0_7, %c0_8] : memref<128x512xbf16, #tpu.memory_space<vmem>>, vector<128x512xbf16>
    %cst_9 = arith.constant 0.000000e+00 : f32
    %8 = vector.broadcast %cst_9 : f32 to vector<8x128xf32>
    %cst_10 = arith.constant 0.000000e+00 : f32
    %9 = vector.broadcast %cst_10 : f32 to vector<8x128xf32>
    %c0_11 = arith.constant 0 : index
    %c0_12 = arith.constant 0 : index
    %10 = vector.load %arg11[%c0_11, %c0_12] : memref<64x512xf32, #tpu.memory_space<vmem>>, vector<8x512xf32>
    %11 = arith.truncf %8 : vector<8x128xf32> to vector<8x128xbf16>
    %cst_13 = arith.constant dense<0.000000e+00> : vector<8x512xf32>
    %12 = tpu.matmul %11, %7, %cst_13 {dimension_numbers = #tpu.dot_dimension_numbers<[1], [0], [0], [1], [0, 0, 1, 1], [], []>} : vector<8x128xbf16>, vector<128x512xbf16>, vector<8x512xf32> -> vector<8x512xf32>
    %13 = arith.addf %10, %12 : vector<8x512xf32>
    %14 = vector.extract_strided_slice %13 {offsets = [0, 0], sizes = [8, 128], strides = [1, 1]} : vector<8x512xf32> to vector<8x128xf32>
    %15 = arith.negf %14 : vector<8x128xf32>
    %16 = math.exp %15 : vector<8x128xf32>
    %cst_14 = arith.constant 1.000000e+00 : f32
    %17 = vector.broadcast %cst_14 : f32 to vector<8x128xf32>
    %18 = arith.addf %17, %16 : vector<8x128xf32>
    %19 = arith.divf %17, %18 : vector<8x128xf32>
    %20 = vector.extract_strided_slice %13 {offsets = [0, 128], sizes = [8, 128], strides = [1, 1]} : vector<8x512xf32> to vector<8x128xf32>
    %21 = arith.negf %20 : vector<8x128xf32>
    %22 = math.exp %21 : vector<8x128xf32>
    %cst_15 = arith.constant 1.000000e+00 : f32
    %23 = vector.broadcast %cst_15 : f32 to vector<8x128xf32>
    %24 = arith.addf %23, %22 : vector<8x128xf32>
    %25 = arith.divf %23, %24 : vector<8x128xf32>
    %26 = vector.extract_strided_slice %13 {offsets = [0, 256], sizes = [8, 128], strides = [1, 1]} : vector<8x512xf32> to vector<8x128xf32>
    %27 = math.tanh %26 : vector<8x128xf32>
    %28 = vector.extract_strided_slice %13 {offsets = [0, 384], sizes = [8, 128], strides = [1, 1]} : vector<8x512xf32> to vector<8x128xf32>
    %29 = arith.negf %28 : vector<8x128xf32>
    %30 = math.exp %29 : vector<8x128xf32>
    %cst_16 = arith.constant 1.000000e+00 : f32
    %31 = vector.broadcast %cst_16 : f32 to vector<8x128xf32>
    %32 = arith.addf %31, %30 : vector<8x128xf32>
    %33 = arith.divf %31, %32 : vector<8x128xf32>
    %34 = arith.mulf %25, %9 : vector<8x128xf32>
    %35 = arith.mulf %19, %27 : vector<8x128xf32>
    %36 = arith.addf %34, %35 : vector<8x128xf32>
    %37 = math.tanh %36 : vector<8x128xf32>
    %38 = arith.mulf %33, %37 : vector<8x128xf32>
    %c8 = arith.constant 8 : index
    %c0_17 = arith.constant 0 : index
    %39 = vector.load %arg11[%c8, %c0_17] : memref<64x512xf32, #tpu.memory_space<vmem>>, vector<8x512xf32>
    %40 = arith.truncf %38 : vector<8x128xf32> to vector<8x128xbf16>
    %cst_18 = arith.constant dense<0.000000e+00> : vector<8x512xf32>
    %41 = tpu.matmul %40, %7, %cst_18 {dimension_numbers = #tpu.dot_dimension_numbers<[1], [0], [0], [1], [0, 0, 1, 1], [], []>} : vector<8x128xbf16>, vector<128x512xbf16>, vector<8x512xf32> -> vector<8x512xf32>
    %42 = arith.addf %39, %41 : vector<8x512xf32>
    %43 = vector.extract_strided_slice %42 {offsets = [0, 0], sizes = [8, 128], strides = [1, 1]} : vector<8x512xf32> to vector<8x128xf32>
    %44 = arith.negf %43 : vector<8x128xf32>
    %45 = math.exp %44 : vector<8x128xf32>
    %cst_19 = arith.constant 1.000000e+00 : f32
    %46 = vector.broadcast %cst_19 : f32 to vector<8x128xf32>
    %47 = arith.addf %46, %45 : vector<8x128xf32>
    %48 = arith.divf %46, %47 : vector<8x128xf32>
    %49 = vector.extract_strided_slice %42 {offsets = [0, 128], sizes = [8, 128], strides = [1, 1]} : vector<8x512xf32> to vector<8x128xf32>
    %50 = arith.negf %49 : vector<8x128xf32>
    %51 = math.exp %50 : vector<8x128xf32>
    %cst_20 = arith.constant 1.000000e+00 : f32
    %52 = vector.broadcast %cst_20 : f32 to vector<8x128xf32>
    %53 = arith.addf %52, %51 : vector<8x128xf32>
    %54 = arith.divf %52, %53 : vector<8x128xf32>
    %55 = vector.extract_strided_slice %42 {offsets = [0, 256], sizes = [8, 128], strides = [1, 1]} : vector<8x512xf32> to vector<8x128xf32>
    %56 = math.tanh %55 : vector<8x128xf32>
    %57 = vector.extract_strided_slice %42 {offsets = [0, 384], sizes = [8, 128], strides = [1, 1]} : vector<8x512xf32> to vector<8x128xf32>
    %58 = arith.negf %57 : vector<8x128xf32>
    %59 = math.exp %58 : vector<8x128xf32>
    %cst_21 = arith.constant 1.000000e+00 : f32
    %60 = vector.broadcast %cst_21 : f32 to vector<8x128xf32>
    %61 = arith.addf %60, %59 : vector<8x128xf32>
    %62 = arith.divf %60, %61 : vector<8x128xf32>
    %63 = arith.mulf %54, %36 : vector<8x128xf32>
    %64 = arith.mulf %48, %56 : vector<8x128xf32>
    %65 = arith.addf %63, %64 : vector<8x128xf32>
    %66 = math.tanh %65 : vector<8x128xf32>
    %67 = arith.mulf %62, %66 : vector<8x128xf32>
    %c16 = arith.constant 16 : index
    %c0_22 = arith.constant 0 : index
    %68 = vector.load %arg11[%c16, %c0_22] : memref<64x512xf32, #tpu.memory_space<vmem>>, vector<8x512xf32>
    %69 = arith.truncf %67 : vector<8x128xf32> to vector<8x128xbf16>
    %cst_23 = arith.constant dense<0.000000e+00> : vector<8x512xf32>
    %70 = tpu.matmul %69, %7, %cst_23 {dimension_numbers = #tpu.dot_dimension_numbers<[1], [0], [0], [1], [0, 0, 1, 1], [], []>} : vector<8x128xbf16>, vector<128x512xbf16>, vector<8x512xf32> -> vector<8x512xf32>
    %71 = arith.addf %68, %70 : vector<8x512xf32>
    %72 = vector.extract_strided_slice %71 {offsets = [0, 0], sizes = [8, 128], strides = [1, 1]} : vector<8x512xf32> to vector<8x128xf32>
    %73 = arith.negf %72 : vector<8x128xf32>
    %74 = math.exp %73 : vector<8x128xf32>
    %cst_24 = arith.constant 1.000000e+00 : f32
    %75 = vector.broadcast %cst_24 : f32 to vector<8x128xf32>
    %76 = arith.addf %75, %74 : vector<8x128xf32>
    %77 = arith.divf %75, %76 : vector<8x128xf32>
    %78 = vector.extract_strided_slice %71 {offsets = [0, 128], sizes = [8, 128], strides = [1, 1]} : vector<8x512xf32> to vector<8x128xf32>
    %79 = arith.negf %78 : vector<8x128xf32>
    %80 = math.exp %79 : vector<8x128xf32>
    %cst_25 = arith.constant 1.000000e+00 : f32
    %81 = vector.broadcast %cst_25 : f32 to vector<8x128xf32>
    %82 = arith.addf %81, %80 : vector<8x128xf32>
    %83 = arith.divf %81, %82 : vector<8x128xf32>
    %84 = vector.extract_strided_slice %71 {offsets = [0, 256], sizes = [8, 128], strides = [1, 1]} : vector<8x512xf32> to vector<8x128xf32>
    %85 = math.tanh %84 : vector<8x128xf32>
    %86 = vector.extract_strided_slice %71 {offsets = [0, 384], sizes = [8, 128], strides = [1, 1]} : vector<8x512xf32> to vector<8x128xf32>
    %87 = arith.negf %86 : vector<8x128xf32>
    %88 = math.exp %87 : vector<8x128xf32>
    %cst_26 = arith.constant 1.000000e+00 : f32
    %89 = vector.broadcast %cst_26 : f32 to vector<8x128xf32>
    %90 = arith.addf %89, %88 : vector<8x128xf32>
    %91 = arith.divf %89, %90 : vector<8x128xf32>
    %92 = arith.mulf %83, %65 : vector<8x128xf32>
    %93 = arith.mulf %77, %85 : vector<8x128xf32>
    %94 = arith.addf %92, %93 : vector<8x128xf32>
    %95 = math.tanh %94 : vector<8x128xf32>
    %96 = arith.mulf %91, %95 : vector<8x128xf32>
    %c24 = arith.constant 24 : index
    %c0_27 = arith.constant 0 : index
    %97 = vector.load %arg11[%c24, %c0_27] : memref<64x512xf32, #tpu.memory_space<vmem>>, vector<8x512xf32>
    %98 = arith.truncf %96 : vector<8x128xf32> to vector<8x128xbf16>
    %cst_28 = arith.constant dense<0.000000e+00> : vector<8x512xf32>
    %99 = tpu.matmul %98, %7, %cst_28 {dimension_numbers = #tpu.dot_dimension_numbers<[1], [0], [0], [1], [0, 0, 1, 1], [], []>} : vector<8x128xbf16>, vector<128x512xbf16>, vector<8x512xf32> -> vector<8x512xf32>
    %100 = arith.addf %97, %99 : vector<8x512xf32>
    %101 = vector.extract_strided_slice %100 {offsets = [0, 0], sizes = [8, 128], strides = [1, 1]} : vector<8x512xf32> to vector<8x128xf32>
    %102 = arith.negf %101 : vector<8x128xf32>
    %103 = math.exp %102 : vector<8x128xf32>
    %cst_29 = arith.constant 1.000000e+00 : f32
    %104 = vector.broadcast %cst_29 : f32 to vector<8x128xf32>
    %105 = arith.addf %104, %103 : vector<8x128xf32>
    %106 = arith.divf %104, %105 : vector<8x128xf32>
    %107 = vector.extract_strided_slice %100 {offsets = [0, 128], sizes = [8, 128], strides = [1, 1]} : vector<8x512xf32> to vector<8x128xf32>
    %108 = arith.negf %107 : vector<8x128xf32>
    %109 = math.exp %108 : vector<8x128xf32>
    %cst_30 = arith.constant 1.000000e+00 : f32
    %110 = vector.broadcast %cst_30 : f32 to vector<8x128xf32>
    %111 = arith.addf %110, %109 : vector<8x128xf32>
    %112 = arith.divf %110, %111 : vector<8x128xf32>
    %113 = vector.extract_strided_slice %100 {offsets = [0, 256], sizes = [8, 128], strides = [1, 1]} : vector<8x512xf32> to vector<8x128xf32>
    %114 = math.tanh %113 : vector<8x128xf32>
    %115 = vector.extract_strided_slice %100 {offsets = [0, 384], sizes = [8, 128], strides = [1, 1]} : vector<8x512xf32> to vector<8x128xf32>
    %116 = arith.negf %115 : vector<8x128xf32>
    %117 = math.exp %116 : vector<8x128xf32>
    %cst_31 = arith.constant 1.000000e+00 : f32
    %118 = vector.broadcast %cst_31 : f32 to vector<8x128xf32>
    %119 = arith.addf %118, %117 : vector<8x128xf32>
    %120 = arith.divf %118, %119 : vector<8x128xf32>
    %121 = arith.mulf %112, %94 : vector<8x128xf32>
    %122 = arith.mulf %106, %114 : vector<8x128xf32>
    %123 = arith.addf %121, %122 : vector<8x128xf32>
    %124 = math.tanh %123 : vector<8x128xf32>
    %125 = arith.mulf %120, %124 : vector<8x128xf32>
    %c32 = arith.constant 32 : index
    %c0_32 = arith.constant 0 : index
    %126 = vector.load %arg11[%c32, %c0_32] : memref<64x512xf32, #tpu.memory_space<vmem>>, vector<8x512xf32>
    %127 = arith.truncf %125 : vector<8x128xf32> to vector<8x128xbf16>
    %cst_33 = arith.constant dense<0.000000e+00> : vector<8x512xf32>
    %128 = tpu.matmul %127, %7, %cst_33 {dimension_numbers = #tpu.dot_dimension_numbers<[1], [0], [0], [1], [0, 0, 1, 1], [], []>} : vector<8x128xbf16>, vector<128x512xbf16>, vector<8x512xf32> -> vector<8x512xf32>
    %129 = arith.addf %126, %128 : vector<8x512xf32>
    %130 = vector.extract_strided_slice %129 {offsets = [0, 0], sizes = [8, 128], strides = [1, 1]} : vector<8x512xf32> to vector<8x128xf32>
    %131 = arith.negf %130 : vector<8x128xf32>
    %132 = math.exp %131 : vector<8x128xf32>
    %cst_34 = arith.constant 1.000000e+00 : f32
    %133 = vector.broadcast %cst_34 : f32 to vector<8x128xf32>
    %134 = arith.addf %133, %132 : vector<8x128xf32>
    %135 = arith.divf %133, %134 : vector<8x128xf32>
    %136 = vector.extract_strided_slice %129 {offsets = [0, 128], sizes = [8, 128], strides = [1, 1]} : vector<8x512xf32> to vector<8x128xf32>
    %137 = arith.negf %136 : vector<8x128xf32>
    %138 = math.exp %137 : vector<8x128xf32>
    %cst_35 = arith.constant 1.000000e+00 : f32
    %139 = vector.broadcast %cst_35 : f32 to vector<8x128xf32>
    %140 = arith.addf %139, %138 : vector<8x128xf32>
    %141 = arith.divf %139, %140 : vector<8x128xf32>
    %142 = vector.extract_strided_slice %129 {offsets = [0, 256], sizes = [8, 128], strides = [1, 1]} : vector<8x512xf32> to vector<8x128xf32>
    %143 = math.tanh %142 : vector<8x128xf32>
    %144 = vector.extract_strided_slice %129 {offsets = [0, 384], sizes = [8, 128], strides = [1, 1]} : vector<8x512xf32> to vector<8x128xf32>
    %145 = arith.negf %144 : vector<8x128xf32>
    %146 = math.exp %145 : vector<8x128xf32>
    %cst_36 = arith.constant 1.000000e+00 : f32
    %147 = vector.broadcast %cst_36 : f32 to vector<8x128xf32>
    %148 = arith.addf %147, %146 : vector<8x128xf32>
    %149 = arith.divf %147, %148 : vector<8x128xf32>
    %150 = arith.mulf %141, %123 : vector<8x128xf32>
    %151 = arith.mulf %135, %143 : vector<8x128xf32>
    %152 = arith.addf %150, %151 : vector<8x128xf32>
    %153 = math.tanh %152 : vector<8x128xf32>
    %154 = arith.mulf %149, %153 : vector<8x128xf32>
    %c40 = arith.constant 40 : index
    %c0_37 = arith.constant 0 : index
    %155 = vector.load %arg11[%c40, %c0_37] : memref<64x512xf32, #tpu.memory_space<vmem>>, vector<8x512xf32>
    %156 = arith.truncf %154 : vector<8x128xf32> to vector<8x128xbf16>
    %cst_38 = arith.constant dense<0.000000e+00> : vector<8x512xf32>
    %157 = tpu.matmul %156, %7, %cst_38 {dimension_numbers = #tpu.dot_dimension_numbers<[1], [0], [0], [1], [0, 0, 1, 1], [], []>} : vector<8x128xbf16>, vector<128x512xbf16>, vector<8x512xf32> -> vector<8x512xf32>
    %158 = arith.addf %155, %157 : vector<8x512xf32>
    %159 = vector.extract_strided_slice %158 {offsets = [0, 0], sizes = [8, 128], strides = [1, 1]} : vector<8x512xf32> to vector<8x128xf32>
    %160 = arith.negf %159 : vector<8x128xf32>
    %161 = math.exp %160 : vector<8x128xf32>
    %cst_39 = arith.constant 1.000000e+00 : f32
    %162 = vector.broadcast %cst_39 : f32 to vector<8x128xf32>
    %163 = arith.addf %162, %161 : vector<8x128xf32>
    %164 = arith.divf %162, %163 : vector<8x128xf32>
    %165 = vector.extract_strided_slice %158 {offsets = [0, 128], sizes = [8, 128], strides = [1, 1]} : vector<8x512xf32> to vector<8x128xf32>
    %166 = arith.negf %165 : vector<8x128xf32>
    %167 = math.exp %166 : vector<8x128xf32>
    %cst_40 = arith.constant 1.000000e+00 : f32
    %168 = vector.broadcast %cst_40 : f32 to vector<8x128xf32>
    %169 = arith.addf %168, %167 : vector<8x128xf32>
    %170 = arith.divf %168, %169 : vector<8x128xf32>
    %171 = vector.extract_strided_slice %158 {offsets = [0, 256], sizes = [8, 128], strides = [1, 1]} : vector<8x512xf32> to vector<8x128xf32>
    %172 = math.tanh %171 : vector<8x128xf32>
    %173 = vector.extract_strided_slice %158 {offsets = [0, 384], sizes = [8, 128], strides = [1, 1]} : vector<8x512xf32> to vector<8x128xf32>
    %174 = arith.negf %173 : vector<8x128xf32>
    %175 = math.exp %174 : vector<8x128xf32>
    %cst_41 = arith.constant 1.000000e+00 : f32
    %176 = vector.broadcast %cst_41 : f32 to vector<8x128xf32>
    %177 = arith.addf %176, %175 : vector<8x128xf32>
    %178 = arith.divf %176, %177 : vector<8x128xf32>
    %179 = arith.mulf %170, %152 : vector<8x128xf32>
    %180 = arith.mulf %164, %172 : vector<8x128xf32>
    %181 = arith.addf %179, %180 : vector<8x128xf32>
    %182 = math.tanh %181 : vector<8x128xf32>
    %183 = arith.mulf %178, %182 : vector<8x128xf32>
    %c48 = arith.constant 48 : index
    %c0_42 = arith.constant 0 : index
    %184 = vector.load %arg11[%c48, %c0_42] : memref<64x512xf32, #tpu.memory_space<vmem>>, vector<8x512xf32>
    %185 = arith.truncf %183 : vector<8x128xf32> to vector<8x128xbf16>
    %cst_43 = arith.constant dense<0.000000e+00> : vector<8x512xf32>
    %186 = tpu.matmul %185, %7, %cst_43 {dimension_numbers = #tpu.dot_dimension_numbers<[1], [0], [0], [1], [0, 0, 1, 1], [], []>} : vector<8x128xbf16>, vector<128x512xbf16>, vector<8x512xf32> -> vector<8x512xf32>
    %187 = arith.addf %184, %186 : vector<8x512xf32>
    %188 = vector.extract_strided_slice %187 {offsets = [0, 0], sizes = [8, 128], strides = [1, 1]} : vector<8x512xf32> to vector<8x128xf32>
    %189 = arith.negf %188 : vector<8x128xf32>
    %190 = math.exp %189 : vector<8x128xf32>
    %cst_44 = arith.constant 1.000000e+00 : f32
    %191 = vector.broadcast %cst_44 : f32 to vector<8x128xf32>
    %192 = arith.addf %191, %190 : vector<8x128xf32>
    %193 = arith.divf %191, %192 : vector<8x128xf32>
    %194 = vector.extract_strided_slice %187 {offsets = [0, 128], sizes = [8, 128], strides = [1, 1]} : vector<8x512xf32> to vector<8x128xf32>
    %195 = arith.negf %194 : vector<8x128xf32>
    %196 = math.exp %195 : vector<8x128xf32>
    %cst_45 = arith.constant 1.000000e+00 : f32
    %197 = vector.broadcast %cst_45 : f32 to vector<8x128xf32>
    %198 = arith.addf %197, %196 : vector<8x128xf32>
    %199 = arith.divf %197, %198 : vector<8x128xf32>
    %200 = vector.extract_strided_slice %187 {offsets = [0, 256], sizes = [8, 128], strides = [1, 1]} : vector<8x512xf32> to vector<8x128xf32>
    %201 = math.tanh %200 : vector<8x128xf32>
    %202 = vector.extract_strided_slice %187 {offsets = [0, 384], sizes = [8, 128], strides = [1, 1]} : vector<8x512xf32> to vector<8x128xf32>
    %203 = arith.negf %202 : vector<8x128xf32>
    %204 = math.exp %203 : vector<8x128xf32>
    %cst_46 = arith.constant 1.000000e+00 : f32
    %205 = vector.broadcast %cst_46 : f32 to vector<8x128xf32>
    %206 = arith.addf %205, %204 : vector<8x128xf32>
    %207 = arith.divf %205, %206 : vector<8x128xf32>
    %208 = arith.mulf %199, %181 : vector<8x128xf32>
    %209 = arith.mulf %193, %201 : vector<8x128xf32>
    %210 = arith.addf %208, %209 : vector<8x128xf32>
    %211 = math.tanh %210 : vector<8x128xf32>
    %212 = arith.mulf %207, %211 : vector<8x128xf32>
    %c56 = arith.constant 56 : index
    %c0_47 = arith.constant 0 : index
    %213 = vector.load %arg11[%c56, %c0_47] : memref<64x512xf32, #tpu.memory_space<vmem>>, vector<8x512xf32>
    %214 = arith.truncf %212 : vector<8x128xf32> to vector<8x128xbf16>
    %cst_48 = arith.constant dense<0.000000e+00> : vector<8x512xf32>
    %215 = tpu.matmul %214, %7, %cst_48 {dimension_numbers = #tpu.dot_dimension_numbers<[1], [0], [0], [1], [0, 0, 1, 1], [], []>} : vector<8x128xbf16>, vector<128x512xbf16>, vector<8x512xf32> -> vector<8x512xf32>
    %216 = arith.addf %213, %215 : vector<8x512xf32>
    %217 = vector.extract_strided_slice %216 {offsets = [0, 0], sizes = [8, 128], strides = [1, 1]} : vector<8x512xf32> to vector<8x128xf32>
    %218 = arith.negf %217 : vector<8x128xf32>
    %219 = math.exp %218 : vector<8x128xf32>
    %cst_49 = arith.constant 1.000000e+00 : f32
    %220 = vector.broadcast %cst_49 : f32 to vector<8x128xf32>
    %221 = arith.addf %220, %219 : vector<8x128xf32>
    %222 = arith.divf %220, %221 : vector<8x128xf32>
    %223 = vector.extract_strided_slice %216 {offsets = [0, 128], sizes = [8, 128], strides = [1, 1]} : vector<8x512xf32> to vector<8x128xf32>
    %224 = arith.negf %223 : vector<8x128xf32>
    %225 = math.exp %224 : vector<8x128xf32>
    %cst_50 = arith.constant 1.000000e+00 : f32
    %226 = vector.broadcast %cst_50 : f32 to vector<8x128xf32>
    %227 = arith.addf %226, %225 : vector<8x128xf32>
    %228 = arith.divf %226, %227 : vector<8x128xf32>
    %229 = vector.extract_strided_slice %216 {offsets = [0, 256], sizes = [8, 128], strides = [1, 1]} : vector<8x512xf32> to vector<8x128xf32>
    %230 = math.tanh %229 : vector<8x128xf32>
    %231 = vector.extract_strided_slice %216 {offsets = [0, 384], sizes = [8, 128], strides = [1, 1]} : vector<8x512xf32> to vector<8x128xf32>
    %232 = arith.negf %231 : vector<8x128xf32>
    %233 = math.exp %232 : vector<8x128xf32>
    %cst_51 = arith.constant 1.000000e+00 : f32
    %234 = vector.broadcast %cst_51 : f32 to vector<8x128xf32>
    %235 = arith.addf %234, %233 : vector<8x128xf32>
    %236 = arith.divf %234, %235 : vector<8x128xf32>
    %237 = arith.mulf %228, %210 : vector<8x128xf32>
    %238 = arith.mulf %222, %230 : vector<8x128xf32>
    %239 = arith.addf %237, %238 : vector<8x128xf32>
    %240 = math.tanh %239 : vector<8x128xf32>
    %241 = arith.mulf %236, %240 : vector<8x128xf32>
    %c0_52 = arith.constant 0 : index
    %c0_53 = arith.constant 0 : index
    %242 = vector.load %arg1[%c0_52, %c0_53] : memref<8x16xbf16, #tpu.memory_space<vmem>>, vector<8x16xbf16>
    %c0_54 = arith.constant 0 : index
    %c0_55 = arith.constant 0 : index
    %243 = vector.load %arg5[%c0_54, %c0_55] : memref<16x512xbf16, #tpu.memory_space<vmem>>, vector<16x512xbf16>
    %cst_56 = arith.constant dense<0.000000e+00> : vector<8x512xf32>
    %244 = tpu.matmul %242, %243, %cst_56 {dimension_numbers = #tpu.dot_dimension_numbers<[1], [0], [0], [1], [0, 0, 1, 1], [], []>} : vector<8x16xbf16>, vector<16x512xbf16>, vector<8x512xf32> -> vector<8x512xf32>
    %c0_57 = arith.constant 0 : index
    %c0_58 = arith.constant 0 : index
    %245 = vector.load %arg6[%c0_57, %c0_58] : memref<1x512xf32, #tpu.memory_space<vmem>>, vector<1x512xf32>
    %246 = vector.broadcast %245 : vector<1x512xf32> to vector<8x512xf32>
    %247 = arith.addf %244, %246 : vector<8x512xf32>
    %cst_59 = arith.constant 0.000000e+00 : f32
    %248 = vector.broadcast %cst_59 : f32 to vector<8x128xf32>
    %249 = vector.extract_strided_slice %247 {offsets = [0, 0], sizes = [8, 128], strides = [1, 1]} : vector<8x512xf32> to vector<8x128xf32>
    %250 = arith.negf %249 : vector<8x128xf32>
    %251 = math.exp %250 : vector<8x128xf32>
    %cst_60 = arith.constant 1.000000e+00 : f32
    %252 = vector.broadcast %cst_60 : f32 to vector<8x128xf32>
    %253 = arith.addf %252, %251 : vector<8x128xf32>
    %254 = arith.divf %252, %253 : vector<8x128xf32>
    %255 = vector.extract_strided_slice %247 {offsets = [0, 128], sizes = [8, 128], strides = [1, 1]} : vector<8x512xf32> to vector<8x128xf32>
    %256 = arith.negf %255 : vector<8x128xf32>
    %257 = math.exp %256 : vector<8x128xf32>
    %cst_61 = arith.constant 1.000000e+00 : f32
    %258 = vector.broadcast %cst_61 : f32 to vector<8x128xf32>
    %259 = arith.addf %258, %257 : vector<8x128xf32>
    %260 = arith.divf %258, %259 : vector<8x128xf32>
    %261 = vector.extract_strided_slice %247 {offsets = [0, 256], sizes = [8, 128], strides = [1, 1]} : vector<8x512xf32> to vector<8x128xf32>
    %262 = math.tanh %261 : vector<8x128xf32>
    %263 = vector.extract_strided_slice %247 {offsets = [0, 384], sizes = [8, 128], strides = [1, 1]} : vector<8x512xf32> to vector<8x128xf32>
    %264 = arith.negf %263 : vector<8x128xf32>
    %265 = math.exp %264 : vector<8x128xf32>
    %cst_62 = arith.constant 1.000000e+00 : f32
    %266 = vector.broadcast %cst_62 : f32 to vector<8x128xf32>
    %267 = arith.addf %266, %265 : vector<8x128xf32>
    %268 = arith.divf %266, %267 : vector<8x128xf32>
    %269 = arith.mulf %260, %248 : vector<8x128xf32>
    %270 = arith.mulf %254, %262 : vector<8x128xf32>
    %271 = arith.addf %269, %270 : vector<8x128xf32>
    %272 = math.tanh %271 : vector<8x128xf32>
    %273 = arith.mulf %268, %272 : vector<8x128xf32>
    %274 = arith.truncf %241 : vector<8x128xf32> to vector<8x128xbf16>
    %c0_63 = arith.constant 0 : index
    %c0_64 = arith.constant 0 : index
    %275 = vector.load %arg7[%c0_63, %c0_64] : memref<128x2xbf16, #tpu.memory_space<vmem>>, vector<128x2xbf16>
    %cst_65 = arith.constant dense<0.000000e+00> : vector<8x2xf32>
    %276 = tpu.matmul %274, %275, %cst_65 {dimension_numbers = #tpu.dot_dimension_numbers<[1], [0], [0], [1], [0, 0, 1, 1], [], []>} : vector<8x128xbf16>, vector<128x2xbf16>, vector<8x2xf32> -> vector<8x2xf32>
    %277 = arith.truncf %273 : vector<8x128xf32> to vector<8x128xbf16>
    %c0_66 = arith.constant 0 : index
    %c0_67 = arith.constant 0 : index
    %278 = vector.load %arg8[%c0_66, %c0_67] : memref<128x2xbf16, #tpu.memory_space<vmem>>, vector<128x2xbf16>
    %cst_68 = arith.constant dense<0.000000e+00> : vector<8x2xf32>
    %279 = tpu.matmul %277, %278, %cst_68 {dimension_numbers = #tpu.dot_dimension_numbers<[1], [0], [0], [1], [0, 0, 1, 1], [], []>} : vector<8x128xbf16>, vector<128x2xbf16>, vector<8x2xf32> -> vector<8x2xf32>
    %280 = arith.addf %276, %279 : vector<8x2xf32>
    %c0_69 = arith.constant 0 : index
    %c0_70 = arith.constant 0 : index
    %281 = vector.load %arg9[%c0_69, %c0_70] : memref<1x2xf32, #tpu.memory_space<vmem>>, vector<1x2xf32>
    %282 = vector.broadcast %281 : vector<1x2xf32> to vector<8x2xf32>
    %283 = arith.addf %280, %282 : vector<8x2xf32>
    %c0_71 = arith.constant 0 : index
    %c0_72 = arith.constant 0 : index
    %284 = vector.load %arg10[%c0_71, %c0_72] : memref<8x2xf32, #tpu.memory_space<vmem>>, vector<8x2xf32>
    tpu.vector_store %arg10[%c0_71, %c0_72], %283 {strides = array<i32>} : memref<8x2xf32, #tpu.memory_space<vmem>>, vector<8x2xf32>,
    return
  }
}

</mosaic_0001>

<llo_original>
// kernel: lstm_model_forward.1
$region0: #{lstm_model_forward.1}
  #allocation0 [shape = 'u32[]', space=smem, size = 0x4, offset = 0x4, fixed_abs, tag = 'smem constant byte address 0x4 - core index']
  #allocation1 [shape = 'u32[72,128]{1,0:T(1,128)}', space=vmem, size = 0x9000, scoped, tag = 'internal scratch']
  #allocation2 [shape = 'f32[64,512]{1,0:T(8,128)}', space=vmem, size = 0x20000, scoped, tag = 'scratch operand']
  %s0 = inlined_call_operand.vmem [shape: bf16[64,16], index: 0, kind: input, shape index: {}]
  %s1 = inlined_call_operand.vmem [shape: bf16[8,16], index: 1, kind: input, shape index: {}]
  %s2 = inlined_call_operand.vmem [shape: bf16[16,512], index: 2, kind: input, shape index: {}]
  %s3 = inlined_call_operand.hbm [shape: bf16[128,512], index: 3, kind: input, shape index: {}]
  %s4 = inlined_call_operand.vmem [shape: f32[1,512], index: 4, kind: input, shape index: {}]
  %s5 = inlined_call_operand.vmem [shape: bf16[16,512], index: 5, kind: input, shape index: {}]
  %s6 = inlined_call_operand.vmem [shape: f32[1,512], index: 6, kind: input, shape index: {}]
  %s7 = inlined_call_operand.vmem [shape: bf16[128,2], index: 7, kind: input, shape index: {}]
  %s8 = inlined_call_operand.vmem [shape: bf16[128,2], index: 8, kind: input, shape index: {}]
  %s9 = inlined_call_operand.vmem [shape: f32[1,2], index: 9, kind: input, shape index: {}]
  %s10 = inlined_call_operand.vmem [shape: f32[8,2], index: 10, kind: output, shape index: {}]
  %s11 = sld [smem:[#allocation0]]
  $region54: #{lstm_model_forward.1} parent=0
    _
  %s13 = ssub.s32 1, %s11
  %s14 = scalar_select 0, %s13, %s11
  $region1: #{lstm_model_forward.1} parent=0
    #allocation3 [shape = 'u8[131072]{0}', space=vmem, size = 0x20000, scoped, tag = 'input window, operand 3, single buffered']
    #allocation4 [shape = 's32[1]{0}', space=sflag, size = 0x4, scoped, tag = 'scoped memory for lstm_model_forward.1']
    %15 = vsyncpa [#allocation4], 0
    // Predicated region
    $region2: #{lstm_model_forward.1} parent=1 // pred_check
      _
    $region3: #{lstm_model_forward.1} parent=1 // pred_check_branch
      %17 = sbr.rel (0) target = $region5
    $region4: #{lstm_model_forward.1} parent=1 // pred_region
      _
    $region5: #{lstm_model_forward.1} parent=1 // pred_fallthru
      _
    // Predicated region
    $region6: #{lstm_model_forward.1} parent=1 // pred_check
      _
    $region7: #{lstm_model_forward.1} parent=1 // pred_check_branch
      %19 = sbr.rel (0) target = $region9
    $region8: #{lstm_model_forward.1} parent=1 // pred_region
      _
    $region9: #{lstm_model_forward.1} parent=1 // pred_fallthru
      _
    // Predicated region
    $region10: #{lstm_model_forward.1} parent=1 // pred_check
      _
    $region11: #{lstm_model_forward.1} parent=1 // pred_check_branch
      %21 = sbr.rel (0) target = $region13
    $region12: #{lstm_model_forward.1} parent=1 // pred_region
      _
    $region13: #{lstm_model_forward.1} parent=1 // pred_fallthru
      _
    // Predicated region
    $region14: #{lstm_model_forward.1} parent=1 // pred_check
      _
    $region15: #{lstm_model_forward.1} parent=1 // pred_check_branch
      %23 = sbr.rel (0) target = $region17
    $region16: #{lstm_model_forward.1} parent=1 // pred_region
      %25 = vsyncadd [#allocation4], 0
      %s26 = sshll.u32 %s3, 4
      %s27 = int_to_ptr.hbm [resolvable:$true] %s26
      %s28 = sshll.u32 [#allocation3], 4
      %s29 = int_to_ptr.vmem [resolvable:$true] %s28
      %34 = dma.hbm_to_vmem [thread:$0]  %s27, 4096, %s29, [#allocation4], 256, 256, 16
    $region17: #{lstm_model_forward.1} parent=1 // pred_fallthru
      _
    // Predicated region
    $region18: #{lstm_model_forward.1} parent=1 // pred_check
      _
    $region19: #{lstm_model_forward.1} parent=1 // pred_check_branch
      %36 = sbr.rel (0) target = $region21
    $region20: #{lstm_model_forward.1} parent=1 // pred_region
      _
    $region21: #{lstm_model_forward.1} parent=1 // pred_fallthru
      _
    // Predicated region
    $region22: #{lstm_model_forward.1} parent=1 // pred_check
      _
    $region23: #{lstm_model_forward.1} parent=1 // pred_check_branch
      %38 = sbr.rel (0) target = $region25
    $region24: #{lstm_model_forward.1} parent=1 // pred_region
      _
    $region25: #{lstm_model_forward.1} parent=1 // pred_fallthru
      _
    // Predicated region
    $region26: #{lstm_model_forward.1} parent=1 // pred_check
      _
    $region27: #{lstm_model_forward.1} parent=1 // pred_check_branch
      %40 = sbr.rel (0) target = $region29
    $region28: #{lstm_model_forward.1} parent=1 // pred_region
      _
    $region29: #{lstm_model_forward.1} parent=1 // pred_fallthru
      _
    // Predicated region
    $region30: #{lstm_model_forward.1} parent=1 // pred_check
      _
    $region31: #{lstm_model_forward.1} parent=1 // pred_check_branch
      %42 = sbr.rel (0) target = $region33
    $region32: #{lstm_model_forward.1} parent=1 // pred_region
      _
    $region33: #{lstm_model_forward.1} parent=1 // pred_fallthru
      _
    // Predicated region
    $region34: #{lstm_model_forward.1} parent=1 // pred_check
      _
    $region35: #{lstm_model_forward.1} parent=1 // pred_check_branch
      %44 = sbr.rel (0) target = $region37
    $region36: #{lstm_model_forward.1} parent=1 // pred_region
      _
    $region37: #{lstm_model_forward.1} parent=1 // pred_fallthru
      _
    // Predicated region
    $region38: #{lstm_model_forward.1} parent=1 // pred_check
      _
    $region39: #{lstm_model_forward.1} parent=1 // pred_check_branch
      %46 = sbr.rel (0) target = $region41
    $region40: #{lstm_model_forward.1} parent=1 // pred_region
      _
    $region41: #{lstm_model_forward.1} parent=1 // pred_fallthru
      _
    // Predicated region
    $region42: #{lstm_model_forward.1} parent=1 // pred_check
      _
    $region43: #{lstm_model_forward.1} parent=1 // pred_check_branch
      %48 = sbr.rel (0) target = $region45
    $region44: #{lstm_model_forward.1} parent=1 // pred_region
      %50 = dma.done [#allocation4], 4096
    $region45: #{lstm_model_forward.1} parent=1 // pred_fallthru
      _
    %v52 = vld [vmem:[%s0] sm:$0xf]
    %v53 = vld [vmem:[%s0 + $0x4] sm:$0xf]
    %v54 = vld [vmem:[%s0 + $0x8] sm:$0xf]
    %v55 = vld [vmem:[%s0 + $0xc] sm:$0xf]
    %v56 = vld [vmem:[%s0 + $0x10] sm:$0xf]
    %v57 = vld [vmem:[%s0 + $0x14] sm:$0xf]
    %v58 = vld [vmem:[%s0 + $0x18] sm:$0xf]
    %v59 = vld [vmem:[%s0 + $0x1c] sm:$0xf]
    %v60 = vld [vmem:[%s2] sm:$0xff]
    %v61 = vld [vmem:[%s2 + $0x8] sm:$0xff]
    %v62 = vld [vmem:[%s2 + $0x10] sm:$0xff]
    %v63 = vld [vmem:[%s2 + $0x18] sm:$0xff]
    %v64 = vld [vmem:[%s4] sm:$0xf]
    %v66 = vperm.slane %v64, 0
    %v67 = vperm.slane %v64, 1
    %v68 = vperm.slane %v64, 2
    %v69 = vperm.slane %v64, 3
    %v82 = vunpack.c.l.b16 %v52
    %v83 = vunpack.c.l.b16 %v53
    %v84 = vunpack.c.l.b16 %v54
    %v85 = vunpack.c.l.b16 %v55
    %v86 = vunpack.c.l.b16 %v56
    %v87 = vunpack.c.l.b16 %v57
    %v88 = vunpack.c.l.b16 %v58
    %v89 = vunpack.c.l.b16 %v59
    %v90 = vpack.c.b16 %v83, %v82
    %v91 = vpack.c.b16 %v85, %v84
    %v92 = vpack.c.b16 %v87, %v86
    %v93 = vpack.c.b16 %v89, %v88
    %v98 = vunpack.c.l.b16 %v60
    %v99 = vunpack.c.h.b16 %v60
    %v100 = vunpack.c.l.b16 %v61
    %v101 = vunpack.c.h.b16 %v61
    %v102 = vunpack.c.l.b16 %v62
    %v103 = vunpack.c.h.b16 %v62
    %v104 = vunpack.c.l.b16 %v63
    %v105 = vunpack.c.h.b16 %v63
    %v106 = vpack.c.b16 %v102, %v98
    %v107 = vpack.c.b16 %v103, %v99
    %v108 = vpack.c.b16 %v104, %v100
    %v109 = vpack.c.b16 %v105, %v101
    %vm114 = vcmask 130048
    %v116 = vsel %vm114, %v90, 0
    %v119 = vsel %vm114, %v91, 0
    %v122 = vsel %vm114, %v92, 0
    %v125 = vsel %vm114, %v93, 0
    %127 = vmatpush.bf16.msra.mxu0 0
    %128 = vmatpush.bf16.msra.mxu0 0
    %129 = vmatpush.bf16.msra.mxu0 0
    %130 = vmatpush.bf16.msra.mxu0 0
    %131 = vmatpush.bf16.msra.mxu0 0
    %132 = vmatpush.bf16.msra.mxu0 0
    %133 = vmatpush.bf16.msra.mxu0 0
    %134 = vmatpush.bf16.msra.mxu0 %v106
    %135 = vmatmul.bf16.gmra.mxu0 %v116
    %v136 = vpop.f32.mrf.mxu0
    %v137 = vadd.f32 %v66, %v136
    %v138 = vpop.f32.mrf.mxu0
    %v139 = vadd.f32 %v66, %v138
    %140 = vmatmul.bf16.gmra.mxu0 %v119
    %v141 = vpop.f32.mrf.mxu0
    %v142 = vadd.f32 %v66, %v141
    %v143 = vpop.f32.mrf.mxu0
    %v144 = vadd.f32 %v66, %v143
    %145 = vmatmul.bf16.gmra.mxu0 %v122
    %v146 = vpop.f32.mrf.mxu0
    %v147 = vadd.f32 %v66, %v146
    %v148 = vpop.f32.mrf.mxu0
    %v149 = vadd.f32 %v66, %v148
    %150 = vmatmul.bf16.gmra.mxu0 %v125
    %v151 = vpop.f32.mrf.mxu0
    %v152 = vadd.f32 %v66, %v151
    %v153 = vpop.f32.mrf.mxu0
    %v154 = vadd.f32 %v66, %v153
    %155 = vdwg.mxu0
    %156 = vmatpush.bf16.msra.mxu0 0
    %157 = vmatpush.bf16.msra.mxu0 0
    %158 = vmatpush.bf16.msra.mxu0 0
    %159 = vmatpush.bf16.msra.mxu0 0
    %160 = vmatpush.bf16.msra.mxu0 0
    %161 = vmatpush.bf16.msra.mxu0 0
    %162 = vmatpush.bf16.msra.mxu0 0
    %163 = vmatpush.bf16.msra.mxu0 %v107
    %164 = vmatmul.bf16.gmra.mxu0 %v116
    %v165 = vpop.f32.mrf.mxu0
    %v166 = vadd.f32 %v67, %v165
    %v167 = vpop.f32.mrf.mxu0
    %v168 = vadd.f32 %v67, %v167
    %169 = vmatmul.bf16.gmra.mxu0 %v119
    %v170 = vpop.f32.mrf.mxu0
    %v171 = vadd.f32 %v67, %v170
    %v172 = vpop.f32.mrf.mxu0
    %v173 = vadd.f32 %v67, %v172
    %174 = vmatmul.bf16.gmra.mxu0 %v122
    %v175 = vpop.f32.mrf.mxu0
    %v176 = vadd.f32 %v67, %v175
    %v177 = vpop.f32.mrf.mxu0
    %v178 = vadd.f32 %v67, %v177
    %179 = vmatmul.bf16.gmra.mxu0 %v125
    %v180 = vpop.f32.mrf.mxu0
    %v181 = vadd.f32 %v67, %v180
    %v182 = vpop.f32.mrf.mxu0
    %v183 = vadd.f32 %v67, %v182
    %184 = vdwg.mxu0
    %185 = vmatpush.bf16.msra.mxu0 0
    %186 = vmatpush.bf16.msra.mxu0 0
    %187 = vmatpush.bf16.msra.mxu0 0
    %188 = vmatpush.bf16.msra.mxu0 0
    %189 = vmatpush.bf16.msra.mxu0 0
    %190 = vmatpush.bf16.msra.mxu0 0
    %191 = vmatpush.bf16.msra.mxu0 0
    %192 = vmatpush.bf16.msra.mxu0 %v108
    %193 = vmatmul.bf16.gmra.mxu0 %v116
    %v194 = vpop.f32.mrf.mxu0
    %v195 = vadd.f32 %v68, %v194
    %v196 = vpop.f32.mrf.mxu0
    %v197 = vadd.f32 %v68, %v196
    %198 = vmatmul.bf16.gmra.mxu0 %v119
    %v199 = vpop.f32.mrf.mxu0
    %v200 = vadd.f32 %v68, %v199
    %v201 = vpop.f32.mrf.mxu0
    %v202 = vadd.f32 %v68, %v201
    %203 = vmatmul.bf16.gmra.mxu0 %v122
    %v204 = vpop.f32.mrf.mxu0
    %v205 = vadd.f32 %v68, %v204
    %v206 = vpop.f32.mrf.mxu0
    %v207 = vadd.f32 %v68, %v206
    %208 = vmatmul.bf16.gmra.mxu0 %v125
    %v209 = vpop.f32.mrf.mxu0
    %v210 = vadd.f32 %v68, %v209
    %v211 = vpop.f32.mrf.mxu0
    %v212 = vadd.f32 %v68, %v211
    %213 = vdwg.mxu0
    %214 = vmatpush.bf16.msra.mxu0 0
    %215 = vmatpush.bf16.msra.mxu0 0
    %216 = vmatpush.bf16.msra.mxu0 0
    %217 = vmatpush.bf16.msra.mxu0 0
    %218 = vmatpush.bf16.msra.mxu0 0
    %219 = vmatpush.bf16.msra.mxu0 0
    %220 = vmatpush.bf16.msra.mxu0 0
    %221 = vmatpush.bf16.msra.mxu0 %v109
    %222 = vmatmul.bf16.gmra.mxu0 %v116
    %v223 = vpop.f32.mrf.mxu0
    %v224 = vadd.f32 %v69, %v223
    %v225 = vpop.f32.mrf.mxu0
    %v226 = vadd.f32 %v69, %v225
    %227 = vmatmul.bf16.gmra.mxu0 %v119
    %v228 = vpop.f32.mrf.mxu0
    %v229 = vadd.f32 %v69, %v228
    %v230 = vpop.f32.mrf.mxu0
    %v231 = vadd.f32 %v69, %v230
    %232 = vmatmul.bf16.gmra.mxu0 %v122
    %v233 = vpop.f32.mrf.mxu0
    %v234 = vadd.f32 %v69, %v233
    %v235 = vpop.f32.mrf.mxu0
    %v236 = vadd.f32 %v69, %v235
    %237 = vmatmul.bf16.gmra.mxu0 %v125
    %v238 = vpop.f32.mrf.mxu0
    %v239 = vadd.f32 %v69, %v238
    %v240 = vpop.f32.mrf.mxu0
    %v241 = vadd.f32 %v69, %v240
    %242 = vdwg.mxu0
    %243 = vst [vmem:[#allocation2] sm:$0xff] %v137
    %244 = vst [vmem:[#allocation2 + $0x8] sm:$0xff] %v166
    %245 = vst [vmem:[#allocation2 + $0x10] sm:$0xff] %v195
    %246 = vst [vmem:[#allocation2 + $0x18] sm:$0xff] %v224
    %247 = vst [vmem:[#allocation2 + $0x20] sm:$0xff] %v139
    %248 = vst [vmem:[#allocation2 + $0x28] sm:$0xff] %v168
    %249 = vst [vmem:[#allocation2 + $0x30] sm:$0xff] %v197
    %250 = vst [vmem:[#allocation2 + $0x38] sm:$0xff] %v226
    %251 = vst [vmem:[#allocation2 + $0x40] sm:$0xff] %v142
    %252 = vst [vmem:[#allocation2 + $0x48] sm:$0xff] %v171
    %253 = vst [vmem:[#allocation2 + $0x50] sm:$0xff] %v200
    %254 = vst [vmem:[#allocation2 + $0x58] sm:$0xff] %v229
    %255 = vst [vmem:[#allocation2 + $0x60] sm:$0xff] %v144
    %256 = vst [vmem:[#allocation2 + $0x68] sm:$0xff] %v173
    %257 = vst [vmem:[#allocation2 + $0x70] sm:$0xff] %v202
    %258 = vst [vmem:[#allocation2 + $0x78] sm:$0xff] %v231
    %259 = vst [vmem:[#allocation2 + $0x80] sm:$0xff] %v147
    %260 = vst [vmem:[#allocation2 + $0x88] sm:$0xff] %v176
    %261 = vst [vmem:[#allocation2 + $0x90] sm:$0xff] %v205
    %262 = vst [vmem:[#allocation2 + $0x98] sm:$0xff] %v234
    %263 = vst [vmem:[#allocation2 + $0xa0] sm:$0xff] %v149
    %264 = vst [vmem:[#allocation2 + $0xa8] sm:$0xff] %v178
    %265 = vst [vmem:[#allocation2 + $0xb0] sm:$0xff] %v207
    %266 = vst [vmem:[#allocation2 + $0xb8] sm:$0xff] %v236
    %267 = vst [vmem:[#allocation2 + $0xc0] sm:$0xff] %v152
    %268 = vst [vmem:[#allocation2 + $0xc8] sm:$0xff] %v181
    %269 = vst [vmem:[#allocation2 + $0xd0] sm:$0xff] %v210
    %270 = vst [vmem:[#allocation2 + $0xd8] sm:$0xff] %v239
    %271 = vst [vmem:[#allocation2 + $0xe0] sm:$0xff] %v154
    %272 = vst [vmem:[#allocation2 + $0xe8] sm:$0xff] %v183
    %273 = vst [vmem:[#allocation2 + $0xf0] sm:$0xff] %v212
    %274 = vst [vmem:[#allocation2 + $0xf8] sm:$0xff] %v241
    %v275 = vld [vmem:[#allocation3] sm:$0xff]
    %v276 = vld [vmem:[#allocation3 + $0x8] sm:$0xff]
    %v277 = vld [vmem:[#allocation3 + $0x10] sm:$0xff]
    %v278 = vld [vmem:[#allocation3 + $0x18] sm:$0xff]
    %v279 = vld [vmem:[#allocation3 + $0x20] sm:$0xff]
    %v280 = vld [vmem:[#allocation3 + $0x28] sm:$0xff]
    %v281 = vld [vmem:[#allocation3 + $0x30] sm:$0xff]
    %v282 = vld [vmem:[#allocation3 + $0x38] sm:$0xff]
    %v283 = vld [vmem:[#allocation3 + $0x40] sm:$0xff]
    %v284 = vld [vmem:[#allocation3 + $0x48] sm:$0xff]
    %v285 = vld [vmem:[#allocation3 + $0x50] sm:$0xff]
    %v286 = vld [vmem:[#allocation3 + $0x58] sm:$0xff]
    %v287 = vld [vmem:[#allocation3 + $0x60] sm:$0xff]
    %v288 = vld [vmem:[#allocation3 + $0x68] sm:$0xff]
    %v289 = vld [vmem:[#allocation3 + $0x70] sm:$0xff]
    %v290 = vld [vmem:[#allocation3 + $0x78] sm:$0xff]
    %v291 = vld [vmem:[#allocation3 + $0x80] sm:$0xff]
    %v292 = vld [vmem:[#allocation3 + $0x88] sm:$0xff]
    %v293 = vld [vmem:[#allocation3 + $0x90] sm:$0xff]
    %v294 = vld [vmem:[#allocation3 + $0x98] sm:$0xff]
    %v295 = vld [vmem:[#allocation3 + $0xa0] sm:$0xff]
    %v296 = vld [vmem:[#allocation3 + $0xa8] sm:$0xff]
    %v297 = vld [vmem:[#allocation3 + $0xb0] sm:$0xff]
    %v298 = vld [vmem:[#allocation3 + $0xb8] sm:$0xff]
    %v299 = vld [vmem:[#allocation3 + $0xc0] sm:$0xff]
    %v300 = vld [vmem:[#allocation3 + $0xc8] sm:$0xff]
    %v301 = vld [vmem:[#allocation3 + $0xd0] sm:$0xff]
    %v302 = vld [vmem:[#allocation3 + $0xd8] sm:$0xff]
    %v303 = vld [vmem:[#allocation3 + $0xe0] sm:$0xff]
    %v304 = vld [vmem:[#allocation3 + $0xe8] sm:$0xff]
    %v305 = vld [vmem:[#allocation3 + $0xf0] sm:$0xff]
    %v306 = vld [vmem:[#allocation3 + $0xf8] sm:$0xff]
    %v307 = vld [vmem:[#allocation2] sm:$0xff]
    %v308 = vld [vmem:[#allocation2 + $0x8] sm:$0xff]
    %v309 = vld [vmem:[#allocation2 + $0x10] sm:$0xff]
    %v310 = vld [vmem:[#allocation2 + $0x18] sm:$0xff]
    %v343 = vunpack.c.l.b16 %v275
    %v344 = vunpack.c.h.b16 %v275
    %v345 = vunpack.c.l.b16 %v276
    %v346 = vunpack.c.h.b16 %v276
    %v347 = vunpack.c.l.b16 %v277
    %v348 = vunpack.c.h.b16 %v277
    %v349 = vunpack.c.l.b16 %v278
    %v350 = vunpack.c.h.b16 %v278
    %v351 = vunpack.c.l.b16 %v279
    %v352 = vunpack.c.h.b16 %v279
    %v353 = vunpack.c.l.b16 %v280
    %v354 = vunpack.c.h.b16 %v280
    %v355 = vunpack.c.l.b16 %v281
    %v356 = vunpack.c.h.b16 %v281
    %v357 = vunpack.c.l.b16 %v282
    %v358 = vunpack.c.h.b16 %v282
    %v359 = vunpack.c.l.b16 %v283
    %v360 = vunpack.c.h.b16 %v283
    %v361 = vunpack.c.l.b16 %v284
    %v362 = vunpack.c.h.b16 %v284
    %v363 = vunpack.c.l.b16 %v285
    %v364 = vunpack.c.h.b16 %v285
    %v365 = vunpack.c.l.b16 %v286
    %v366 = vunpack.c.h.b16 %v286
    %v367 = vunpack.c.l.b16 %v287
    %v368 = vunpack.c.h.b16 %v287
    %v369 = vunpack.c.l.b16 %v288
    %v370 = vunpack.c.h.b16 %v288
    %v371 = vunpack.c.l.b16 %v289
    %v372 = vunpack.c.h.b16 %v289
    %v373 = vunpack.c.l.b16 %v290
    %v374 = vunpack.c.h.b16 %v290
    %v375 = vunpack.c.l.b16 %v291
    %v376 = vunpack.c.h.b16 %v291
    %v377 = vunpack.c.l.b16 %v292
    %v378 = vunpack.c.h.b16 %v292
    %v379 = vunpack.c.l.b16 %v293
    %v380 = vunpack.c.h.b16 %v293
    %v381 = vunpack.c.l.b16 %v294
    %v382 = vunpack.c.h.b16 %v294
    %v383 = vunpack.c.l.b16 %v295
    %v384 = vunpack.c.h.b16 %v295
    %v385 = vunpack.c.l.b16 %v296
    %v386 = vunpack.c.h.b16 %v296
    %v387 = vunpack.c.l.b16 %v297
    %v388 = vunpack.c.h.b16 %v297
    %v389 = vunpack.c.l.b16 %v298
    %v390 = vunpack.c.h.b16 %v298
    %v391 = vunpack.c.l.b16 %v299
    %v392 = vunpack.c.h.b16 %v299
    %v393 = vunpack.c.l.b16 %v300
    %v394 = vunpack.c.h.b16 %v300
    %v395 = vunpack.c.l.b16 %v301
    %v396 = vunpack.c.h.b16 %v301
    %v397 = vunpack.c.l.b16 %v302
    %v398 = vunpack.c.h.b16 %v302
    %v399 = vunpack.c.l.b16 %v303
    %v400 = vunpack.c.h.b16 %v303
    %v401 = vunpack.c.l.b16 %v304
    %v402 = vunpack.c.h.b16 %v304
    %v403 = vunpack.c.l.b16 %v305
    %v404 = vunpack.c.h.b16 %v305
    %v405 = vunpack.c.l.b16 %v306
    %v406 = vunpack.c.h.b16 %v306
    %v407 = vpack.c.b16 %v347, %v343
    %v408 = vpack.c.b16 %v348, %v344
    %v409 = vpack.c.b16 %v349, %v345
    %v410 = vpack.c.b16 %v350, %v346
    %v411 = vpack.c.b16 %v355, %v351
    %v412 = vpack.c.b16 %v356, %v352
    %v413 = vpack.c.b16 %v357, %v353
    %v414 = vpack.c.b16 %v358, %v354
    %v415 = vpack.c.b16 %v363, %v359
    %v416 = vpack.c.b16 %v364, %v360
    %v417 = vpack.c.b16 %v365, %v361
    %v418 = vpack.c.b16 %v366, %v362
    %v419 = vpack.c.b16 %v371, %v367
    %v420 = vpack.c.b16 %v372, %v368
    %v421 = vpack.c.b16 %v373, %v369
    %v422 = vpack.c.b16 %v374, %v370
    %v423 = vpack.c.b16 %v379, %v375
    %v424 = vpack.c.b16 %v380, %v376
    %v425 = vpack.c.b16 %v381, %v377
    %v426 = vpack.c.b16 %v382, %v378
    %v427 = vpack.c.b16 %v387, %v383
    %v428 = vpack.c.b16 %v388, %v384
    %v429 = vpack.c.b16 %v389, %v385
    %v430 = vpack.c.b16 %v390, %v386
    %v431 = vpack.c.b16 %v395, %v391
    %v432 = vpack.c.b16 %v396, %v392
    %v433 = vpack.c.b16 %v397, %v393
    %v434 = vpack.c.b16 %v398, %v394
    %v435 = vpack.c.b16 %v403, %v399
    %v436 = vpack.c.b16 %v404, %v400
    %v437 = vpack.c.b16 %v405, %v401
    %v438 = vpack.c.b16 %v406, %v402
    %471 = vmatpush.bf16.msra.mxu0 %v435
    %472 = vmatpush.bf16.msra.mxu0 %v431
    %473 = vmatpush.bf16.msra.mxu0 %v427
    %474 = vmatpush.bf16.msra.mxu0 %v423
    %475 = vmatpush.bf16.msra.mxu0 %v419
    %476 = vmatpush.bf16.msra.mxu0 %v415
    %477 = vmatpush.bf16.msra.mxu0 %v411
    %478 = vmatpush.bf16.msra.mxu0 %v407
    %479 = vmatmul.bf16.gmra.mxu0 0
    %v480 = vpop.f32.mrf.mxu0
    %v481 = vadd.f32 0.0, %v480
    %v482 = vpop.f32.mrf.mxu0
    %483 = vdwg.mxu0
    %484 = vmatpush.bf16.msra.mxu0 %v436
    %485 = vmatpush.bf16.msra.mxu0 %v432
    %486 = vmatpush.bf16.msra.mxu0 %v428
    %487 = vmatpush.bf16.msra.mxu0 %v424
    %488 = vmatpush.bf16.msra.mxu0 %v420
    %489 = vmatpush.bf16.msra.mxu0 %v416
    %490 = vmatpush.bf16.msra.mxu0 %v412
    %491 = vmatpush.bf16.msra.mxu0 %v408
    %492 = vmatmul.bf16.gmra.mxu0 0
    %v493 = vpop.f32.mrf.mxu0
    %v494 = vadd.f32 0.0, %v493
    %v495 = vpop.f32.mrf.mxu0
    %496 = vdwg.mxu0
    %497 = vmatpush.bf16.msra.mxu0 %v437
    %498 = vmatpush.bf16.msra.mxu0 %v433
    %499 = vmatpush.bf16.msra.mxu0 %v429
    %500 = vmatpush.bf16.msra.mxu0 %v425
    %501 = vmatpush.bf16.msra.mxu0 %v421
    %502 = vmatpush.bf16.msra.mxu0 %v417
    %503 = vmatpush.bf16.msra.mxu0 %v413
    %504 = vmatpush.bf16.msra.mxu0 %v409
    %505 = vmatmul.bf16.gmra.mxu0 0
    %v506 = vpop.f32.mrf.mxu0
    %v507 = vadd.f32 0.0, %v506
    %v508 = vpop.f32.mrf.mxu0
    %509 = vdwg.mxu0
    %510 = vmatpush.bf16.msra.mxu0 %v438
    %511 = vmatpush.bf16.msra.mxu0 %v434
    %512 = vmatpush.bf16.msra.mxu0 %v430
    %513 = vmatpush.bf16.msra.mxu0 %v426
    %514 = vmatpush.bf16.msra.mxu0 %v422
    %515 = vmatpush.bf16.msra.mxu0 %v418
    %516 = vmatpush.bf16.msra.mxu0 %v414
    %517 = vmatpush.bf16.msra.mxu0 %v410
    %518 = vmatmul.bf16.gmra.mxu0 0
    %v519 = vpop.f32.mrf.mxu0
    %v520 = vadd.f32 0.0, %v519
    %v521 = vpop.f32.mrf.mxu0
    %522 = vdwg.mxu0
    %v523 = vadd.f32 %v307, %v481
    %v524 = vadd.f32 %v308, %v494
    %v525 = vadd.f32 %v309, %v507
    %v526 = vadd.f32 %v310, %v520
    %v527 = vxor.u32 %v523, 2147483648
    %v528 = vmul.f32 %v527, 1.442695
    %v529 = vpow.pop %v528
    %v530 = vadd.f32 %v529, 1.0
    %v531 = vrcp.pop %v530
    %v532 = vmul.f32 %v530, %v531
    %v533 = vsub.f32 1.0, %v532
    %v534 = vmul.f32 %v531, %v533
    %v535 = vadd.f32 %v531, %v534
    %vm536 = vweird.f32 %v530
    %vm537 = vweird.f32 %v531
    %vm538 = vmor %vm536, %vm537
    %v539 = vsel %vm538, %v531, %v535
    %v540 = vand.u32 2147483647, %v530
    %vm541 = vcmp.eq.f32.partialorder %v540, 8.507059e+37
    %v542 = vand.u32 %v530, 2147483648
    %v543 = vor.u32 1.1754944e-38, %v542
    %v544 = vsel %vm541, %v543, %v539
    %v545 = vmul.f32 1.0, %v544
    %v546 = vxor.u32 %v524, 2147483648
    %v547 = vmul.f32 %v546, 1.442695
    %v548 = vpow.pop %v547
    %v549 = vadd.f32 %v548, 1.0
    %v550 = vrcp.pop %v549
    %v551 = vmul.f32 %v549, %v550
    %v552 = vsub.f32 1.0, %v551
    %v553 = vmul.f32 %v550, %v552
    %v554 = vadd.f32 %v550, %v553
    %vm555 = vweird.f32 %v549
    %vm556 = vweird.f32 %v550
    %vm557 = vmor %vm555, %vm556
    %v558 = vsel %vm557, %v550, %v554
    %v559 = vand.u32 2147483647, %v549
    %vm560 = vcmp.eq.f32.partialorder %v559, 8.507059e+37
    %v561 = vand.u32 %v549, 2147483648
    %v562 = vor.u32 1.1754944e-38, %v561
    %v563 = vsel %vm560, %v562, %v558
    %v564 = vmul.f32 1.0, %v563
    %v565 = vtanh.pop %v525
    %v566 = vxor.u32 %v526, 2147483648
    %v567 = vmul.f32 %v566, 1.442695
    %v568 = vpow.pop %v567
    %v569 = vadd.f32 %v568, 1.0
    %v570 = vrcp.pop %v569
    %v571 = vmul.f32 %v569, %v570
    %v572 = vsub.f32 1.0, %v571
    %v573 = vmul.f32 %v570, %v572
    %v574 = vadd.f32 %v570, %v573
    %vm575 = vweird.f32 %v569
    %vm576 = vweird.f32 %v570
    %vm577 = vmor %vm575, %vm576
    %v578 = vsel %vm577, %v570, %v574
    %v579 = vand.u32 2147483647, %v569
    %vm580 = vcmp.eq.f32.partialorder %v579, 8.507059e+37
    %v581 = vand.u32 %v569, 2147483648
    %v582 = vor.u32 1.1754944e-38, %v581
    %v583 = vsel %vm580, %v582, %v578
    %v584 = vmul.f32 1.0, %v583
    %v585 = vmul.f32 %v564, 0.0
    %v586 = vmul.f32 %v545, %v565
    %v587 = vadd.f32 %v585, %v586
    %v588 = vtanh.pop %v587
    %v589 = vmul.f32 %v584, %v588
    %v590 = vld [vmem:[#allocation2 + $0x20] sm:$0xff]
    %v591 = vld [vmem:[#allocation2 + $0x28] sm:$0xff]
    %v592 = vld [vmem:[#allocation2 + $0x30] sm:$0xff]
    %v593 = vld [vmem:[#allocation2 + $0x38] sm:$0xff]
    %v594 = vpack.c.bf16 %v589, %v589
    %595 = vmatpush.bf16.msra.mxu0 %v435
    %596 = vmatpush.bf16.msra.mxu0 %v431
    %597 = vmatpush.bf16.msra.mxu0 %v427
    %598 = vmatpush.bf16.msra.mxu0 %v423
    %599 = vmatpush.bf16.msra.mxu0 %v419
    %600 = vmatpush.bf16.msra.mxu0 %v415
    %601 = vmatpush.bf16.msra.mxu0 %v411
    %602 = vmatpush.bf16.msra.mxu0 %v407
    %603 = vmatmul.bf16.gmra.mxu0 %v594
    %v604 = vpop.f32.mrf.mxu0
    %v605 = vadd.f32 0.0, %v604
    %v606 = vpop.f32.mrf.mxu0
    %607 = vdwg.mxu0
    %608 = vmatpush.bf16.msra.mxu0 %v436
    %609 = vmatpush.bf16.msra.mxu0 %v432
    %610 = vmatpush.bf16.msra.mxu0 %v428
    %611 = vmatpush.bf16.msra.mxu0 %v424
    %612 = vmatpush.bf16.msra.mxu0 %v420
    %613 = vmatpush.bf16.msra.mxu0 %v416
    %614 = vmatpush.bf16.msra.mxu0 %v412
    %615 = vmatpush.bf16.msra.mxu0 %v408
    %616 = vmatmul.bf16.gmra.mxu0 %v594
    %v617 = vpop.f32.mrf.mxu0
    %v618 = vadd.f32 0.0, %v617
    %v619 = vpop.f32.mrf.mxu0
    %620 = vdwg.mxu0
    %621 = vmatpush.bf16.msra.mxu0 %v437
    %622 = vmatpush.bf16.msra.mxu0 %v433
    %623 = vmatpush.bf16.msra.mxu0 %v429
    %624 = vmatpush.bf16.msra.mxu0 %v425
    %625 = vmatpush.bf16.msra.mxu0 %v421
    %626 = vmatpush.bf16.msra.mxu0 %v417
    %627 = vmatpush.bf16.msra.mxu0 %v413
    %628 = vmatpush.bf16.msra.mxu0 %v409
    %629 = vmatmul.bf16.gmra.mxu0 %v594
    %v630 = vpop.f32.mrf.mxu0
    %v631 = vadd.f32 0.0, %v630
    %v632 = vpop.f32.mrf.mxu0
    %633 = vdwg.mxu0
    %634 = vmatpush.bf16.msra.mxu0 %v438
    %635 = vmatpush.bf16.msra.mxu0 %v434
    %636 = vmatpush.bf16.msra.mxu0 %v430
    %637 = vmatpush.bf16.msra.mxu0 %v426
    %638 = vmatpush.bf16.msra.mxu0 %v422
    %639 = vmatpush.bf16.msra.mxu0 %v418
    %640 = vmatpush.bf16.msra.mxu0 %v414
    %641 = vmatpush.bf16.msra.mxu0 %v410
    %642 = vmatmul.bf16.gmra.mxu0 %v594
    %v643 = vpop.f32.mrf.mxu0
    %v644 = vadd.f32 0.0, %v643
    %v645 = vpop.f32.mrf.mxu0
    %646 = vdwg.mxu0
    %v647 = vadd.f32 %v590, %v605
    %v648 = vadd.f32 %v591, %v618
    %v649 = vadd.f32 %v592, %v631
    %v650 = vadd.f32 %v593, %v644
    %v651 = vxor.u32 %v647, 2147483648
    %v652 = vmul.f32 %v651, 1.442695
    %v653 = vpow.pop %v652
    %v654 = vadd.f32 %v653, 1.0
    %v655 = vrcp.pop %v654
    %v656 = vmul.f32 %v654, %v655
    %v657 = vsub.f32 1.0, %v656
    %v658 = vmul.f32 %v655, %v657
    %v659 = vadd.f32 %v655, %v658
    %vm660 = vweird.f32 %v654
    %vm661 = vweird.f32 %v655
    %vm662 = vmor %vm660, %vm661
    %v663 = vsel %vm662, %v655, %v659
    %v664 = vand.u32 2147483647, %v654
    %vm665 = vcmp.eq.f32.partialorder %v664, 8.507059e+37
    %v666 = vand.u32 %v654, 2147483648
    %v667 = vor.u32 1.1754944e-38, %v666
    %v668 = vsel %vm665, %v667, %v663
    %v669 = vmul.f32 1.0, %v668
    %v670 = vxor.u32 %v648, 2147483648
    %v671 = vmul.f32 %v670, 1.442695
    %v672 = vpow.pop %v671
    %v673 = vadd.f32 %v672, 1.0
    %v674 = vrcp.pop %v673
    %v675 = vmul.f32 %v673, %v674
    %v676 = vsub.f32 1.0, %v675
    %v677 = vmul.f32 %v674, %v676
    %v678 = vadd.f32 %v674, %v677
    %vm679 = vweird.f32 %v673
    %vm680 = vweird.f32 %v674
    %vm681 = vmor %vm679, %vm680
    %v682 = vsel %vm681, %v674, %v678
    %v683 = vand.u32 2147483647, %v673
    %vm684 = vcmp.eq.f32.partialorder %v683, 8.507059e+37
    %v685 = vand.u32 %v673, 2147483648
    %v686 = vor.u32 1.1754944e-38, %v685
    %v687 = vsel %vm684, %v686, %v682
    %v688 = vmul.f32 1.0, %v687
    %v689 = vtanh.pop %v649
    %v690 = vxor.u32 %v650, 2147483648
    %v691 = vmul.f32 %v690, 1.442695
    %v692 = vpow.pop %v691
    %v693 = vadd.f32 %v692, 1.0
    %v694 = vrcp.pop %v693
    %v695 = vmul.f32 %v693, %v694
    %v696 = vsub.f32 1.0, %v695
    %v697 = vmul.f32 %v694, %v696
    %v698 = vadd.f32 %v694, %v697
    %vm699 = vweird.f32 %v693
    %vm700 = vweird.f32 %v694
    %vm701 = vmor %vm699, %vm700
    %v702 = vsel %vm701, %v694, %v698
    %v703 = vand.u32 2147483647, %v693
    %vm704 = vcmp.eq.f32.partialorder %v703, 8.507059e+37
    %v705 = vand.u32 %v693, 2147483648
    %v706 = vor.u32 1.1754944e-38, %v705
    %v707 = vsel %vm704, %v706, %v702
    %v708 = vmul.f32 1.0, %v707
    %v709 = vmul.f32 %v688, %v587
    %v710 = vmul.f32 %v669, %v689
    %v711 = vadd.f32 %v709, %v710
    %v712 = vtanh.pop %v711
    %v713 = vmul.f32 %v708, %v712
    %v714 = vld [vmem:[#allocation2 + $0x40] sm:$0xff]
    %v715 = vld [vmem:[#allocation2 + $0x48] sm:$0xff]
    %v716 = vld [vmem:[#allocation2 + $0x50] sm:$0xff]
    %v717 = vld [vmem:[#allocation2 + $0x58] sm:$0xff]
    %v718 = vpack.c.bf16 %v713, %v713
    %719 = vmatpush.bf16.msra.mxu0 %v435
    %720 = vmatpush.bf16.msra.mxu0 %v431
    %721 = vmatpush.bf16.msra.mxu0 %v427
    %722 = vmatpush.bf16.msra.mxu0 %v423
    %723 = vmatpush.bf16.msra.mxu0 %v419
    %724 = vmatpush.bf16.msra.mxu0 %v415
    %725 = vmatpush.bf16.msra.mxu0 %v411
    %726 = vmatpush.bf16.msra.mxu0 %v407
    %727 = vmatmul.bf16.gmra.mxu0 %v718
    %v728 = vpop.f32.mrf.mxu0
    %v729 = vadd.f32 0.0, %v728
    %v730 = vpop.f32.mrf.mxu0
    %731 = vdwg.mxu0
    %732 = vmatpush.bf16.msra.mxu0 %v436
    %733 = vmatpush.bf16.msra.mxu0 %v432
    %734 = vmatpush.bf16.msra.mxu0 %v428
    %735 = vmatpush.bf16.msra.mxu0 %v424
    %736 = vmatpush.bf16.msra.mxu0 %v420
    %737 = vmatpush.bf16.msra.mxu0 %v416
    %738 = vmatpush.bf16.msra.mxu0 %v412
    %739 = vmatpush.bf16.msra.mxu0 %v408
    %740 = vmatmul.bf16.gmra.mxu0 %v718
    %v741 = vpop.f32.mrf.mxu0
    %v742 = vadd.f32 0.0, %v741
    %v743 = vpop.f32.mrf.mxu0
    %744 = vdwg.mxu0
    %745 = vmatpush.bf16.msra.mxu0 %v437
    %746 = vmatpush.bf16.msra.mxu0 %v433
    %747 = vmatpush.bf16.msra.mxu0 %v429
    %748 = vmatpush.bf16.msra.mxu0 %v425
    %749 = vmatpush.bf16.msra.mxu0 %v421
    %750 = vmatpush.bf16.msra.mxu0 %v417
    %751 = vmatpush.bf16.msra.mxu0 %v413
    %752 = vmatpush.bf16.msra.mxu0 %v409
    %753 = vmatmul.bf16.gmra.mxu0 %v718
    %v754 = vpop.f32.mrf.mxu0
    %v755 = vadd.f32 0.0, %v754
    %v756 = vpop.f32.mrf.mxu0
    %757 = vdwg.mxu0
    %758 = vmatpush.bf16.msra.mxu0 %v438
    %759 = vmatpush.bf16.msra.mxu0 %v434
    %760 = vmatpush.bf16.msra.mxu0 %v430
    %761 = vmatpush.bf16.msra.mxu0 %v426
    %762 = vmatpush.bf16.msra.mxu0 %v422
    %763 = vmatpush.bf16.msra.mxu0 %v418
    %764 = vmatpush.bf16.msra.mxu0 %v414
    %765 = vmatpush.bf16.msra.mxu0 %v410
    %766 = vmatmul.bf16.gmra.mxu0 %v718
    %v767 = vpop.f32.mrf.mxu0
    %v768 = vadd.f32 0.0, %v767
    %v769 = vpop.f32.mrf.mxu0
    %770 = vdwg.mxu0
    %v771 = vadd.f32 %v714, %v729
    %v772 = vadd.f32 %v715, %v742
    %v773 = vadd.f32 %v716, %v755
    %v774 = vadd.f32 %v717, %v768
    %v775 = vxor.u32 %v771, 2147483648
    %v776 = vmul.f32 %v775, 1.442695
    %v777 = vpow.pop %v776
    %v778 = vadd.f32 %v777, 1.0
    %v779 = vrcp.pop %v778
    %v780 = vmul.f32 %v778, %v779
    %v781 = vsub.f32 1.0, %v780
    %v782 = vmul.f32 %v779, %v781
    %v783 = vadd.f32 %v779, %v782
    %vm784 = vweird.f32 %v778
    %vm785 = vweird.f32 %v779
    %vm786 = vmor %vm784, %vm785
    %v787 = vsel %vm786, %v779, %v783
    %v788 = vand.u32 2147483647, %v778
    %vm789 = vcmp.eq.f32.partialorder %v788, 8.507059e+37
    %v790 = vand.u32 %v778, 2147483648
    %v791 = vor.u32 1.1754944e-38, %v790
    %v792 = vsel %vm789, %v791, %v787
    %v793 = vmul.f32 1.0, %v792
    %v794 = vxor.u32 %v772, 2147483648
    %v795 = vmul.f32 %v794, 1.442695
    %v796 = vpow.pop %v795
    %v797 = vadd.f32 %v796, 1.0
    %v798 = vrcp.pop %v797
    %v799 = vmul.f32 %v797, %v798
    %v800 = vsub.f32 1.0, %v799
    %v801 = vmul.f32 %v798, %v800
    %v802 = vadd.f32 %v798, %v801
    %vm803 = vweird.f32 %v797
    %vm804 = vweird.f32 %v798
    %vm805 = vmor %vm803, %vm804
    %v806 = vsel %vm805, %v798, %v802
    %v807 = vand.u32 2147483647, %v797
    %vm808 = vcmp.eq.f32.partialorder %v807, 8.507059e+37
    %v809 = vand.u32 %v797, 2147483648
    %v810 = vor.u32 1.1754944e-38, %v809
    %v811 = vsel %vm808, %v810, %v806
    %v812 = vmul.f32 1.0, %v811
    %v813 = vtanh.pop %v773
    %v814 = vxor.u32 %v774, 2147483648
    %v815 = vmul.f32 %v814, 1.442695
    %v816 = vpow.pop %v815
    %v817 = vadd.f32 %v816, 1.0
    %v818 = vrcp.pop %v817
    %v819 = vmul.f32 %v817, %v818
    %v820 = vsub.f32 1.0, %v819
    %v821 = vmul.f32 %v818, %v820
    %v822 = vadd.f32 %v818, %v821
    %vm823 = vweird.f32 %v817
    %vm824 = vweird.f32 %v818
    %vm825 = vmor %vm823, %vm824
    %v826 = vsel %vm825, %v818, %v822
    %v827 = vand.u32 2147483647, %v817
    %vm828 = vcmp.eq.f32.partialorder %v827, 8.507059e+37
    %v829 = vand.u32 %v817, 2147483648
    %v830 = vor.u32 1.1754944e-38, %v829
    %v831 = vsel %vm828, %v830, %v826
    %v832 = vmul.f32 1.0, %v831
    %v833 = vmul.f32 %v812, %v711
    %v834 = vmul.f32 %v793, %v813
    %v835 = vadd.f32 %v833, %v834
    %v836 = vtanh.pop %v835
    %v837 = vmul.f32 %v832, %v836
    %v838 = vld [vmem:[#allocation2 + $0x60] sm:$0xff]
    %v839 = vld [vmem:[#allocation2 + $0x68] sm:$0xff]
    %v840 = vld [vmem:[#allocation2 + $0x70] sm:$0xff]
    %v841 = vld [vmem:[#allocation2 + $0x78] sm:$0xff]
    %v842 = vpack.c.bf16 %v837, %v837
    %843 = vmatpush.bf16.msra.mxu0 %v435
    %844 = vmatpush.bf16.msra.mxu0 %v431
    %845 = vmatpush.bf16.msra.mxu0 %v427
    %846 = vmatpush.bf16.msra.mxu0 %v423
    %847 = vmatpush.bf16.msra.mxu0 %v419
    %848 = vmatpush.bf16.msra.mxu0 %v415
    %849 = vmatpush.bf16.msra.mxu0 %v411
    %850 = vmatpush.bf16.msra.mxu0 %v407
    %851 = vmatmul.bf16.gmra.mxu0 %v842
    %v852 = vpop.f32.mrf.mxu0
    %v853 = vadd.f32 0.0, %v852
    %v854 = vpop.f32.mrf.mxu0
    %855 = vdwg.mxu0
    %856 = vmatpush.bf16.msra.mxu0 %v436
    %857 = vmatpush.bf16.msra.mxu0 %v432
    %858 = vmatpush.bf16.msra.mxu0 %v428
    %859 = vmatpush.bf16.msra.mxu0 %v424
    %860 = vmatpush.bf16.msra.mxu0 %v420
    %861 = vmatpush.bf16.msra.mxu0 %v416
    %862 = vmatpush.bf16.msra.mxu0 %v412
    %863 = vmatpush.bf16.msra.mxu0 %v408
    %864 = vmatmul.bf16.gmra.mxu0 %v842
    %v865 = vpop.f32.mrf.mxu0
    %v866 = vadd.f32 0.0, %v865
    %v867 = vpop.f32.mrf.mxu0
    %868 = vdwg.mxu0
    %869 = vmatpush.bf16.msra.mxu0 %v437
    %870 = vmatpush.bf16.msra.mxu0 %v433
    %871 = vmatpush.bf16.msra.mxu0 %v429
    %872 = vmatpush.bf16.msra.mxu0 %v425
    %873 = vmatpush.bf16.msra.mxu0 %v421
    %874 = vmatpush.bf16.msra.mxu0 %v417
    %875 = vmatpush.bf16.msra.mxu0 %v413
    %876 = vmatpush.bf16.msra.mxu0 %v409
    %877 = vmatmul.bf16.gmra.mxu0 %v842
    %v878 = vpop.f32.mrf.mxu0
    %v879 = vadd.f32 0.0, %v878
    %v880 = vpop.f32.mrf.mxu0
    %881 = vdwg.mxu0
    %882 = vmatpush.bf16.msra.mxu0 %v438
    %883 = vmatpush.bf16.msra.mxu0 %v434
    %884 = vmatpush.bf16.msra.mxu0 %v430
    %885 = vmatpush.bf16.msra.mxu0 %v426
    %886 = vmatpush.bf16.msra.mxu0 %v422
    %887 = vmatpush.bf16.msra.mxu0 %v418
    %888 = vmatpush.bf16.msra.mxu0 %v414
    %889 = vmatpush.bf16.msra.mxu0 %v410
    %890 = vmatmul.bf16.gmra.mxu0 %v842
    %v891 = vpop.f32.mrf.mxu0
    %v892 = vadd.f32 0.0, %v891
    %v893 = vpop.f32.mrf.mxu0
    %894 = vdwg.mxu0
    %v895 = vadd.f32 %v838, %v853
    %v896 = vadd.f32 %v839, %v866
    %v897 = vadd.f32 %v840, %v879
    %v898 = vadd.f32 %v841, %v892
    %v899 = vxor.u32 %v895, 2147483648
    %v900 = vmul.f32 %v899, 1.442695
    %v901 = vpow.pop %v900
    %v902 = vadd.f32 %v901, 1.0
    %v903 = vrcp.pop %v902
    %v904 = vmul.f32 %v902, %v903
    %v905 = vsub.f32 1.0, %v904
    %v906 = vmul.f32 %v903, %v905
    %v907 = vadd.f32 %v903, %v906
    %vm908 = vweird.f32 %v902
    %vm909 = vweird.f32 %v903
    %vm910 = vmor %vm908, %vm909
    %v911 = vsel %vm910, %v903, %v907
    %v912 = vand.u32 2147483647, %v902
    %vm913 = vcmp.eq.f32.partialorder %v912, 8.507059e+37
    %v914 = vand.u32 %v902, 2147483648
    %v915 = vor.u32 1.1754944e-38, %v914
    %v916 = vsel %vm913, %v915, %v911
    %v917 = vmul.f32 1.0, %v916
    %v918 = vxor.u32 %v896, 2147483648
    %v919 = vmul.f32 %v918, 1.442695
    %v920 = vpow.pop %v919
    %v921 = vadd.f32 %v920, 1.0
    %v922 = vrcp.pop %v921
    %v923 = vmul.f32 %v921, %v922
    %v924 = vsub.f32 1.0, %v923
    %v925 = vmul.f32 %v922, %v924
    %v926 = vadd.f32 %v922, %v925
    %vm927 = vweird.f32 %v921
    %vm928 = vweird.f32 %v922
    %vm929 = vmor %vm927, %vm928
    %v930 = vsel %vm929, %v922, %v926
    %v931 = vand.u32 2147483647, %v921
    %vm932 = vcmp.eq.f32.partialorder %v931, 8.507059e+37
    %v933 = vand.u32 %v921, 2147483648
    %v934 = vor.u32 1.1754944e-38, %v933
    %v935 = vsel %vm932, %v934, %v930
    %v936 = vmul.f32 1.0, %v935
    %v937 = vtanh.pop %v897
    %v938 = vxor.u32 %v898, 2147483648
    %v939 = vmul.f32 %v938, 1.442695
    %v940 = vpow.pop %v939
    %v941 = vadd.f32 %v940, 1.0
    %v942 = vrcp.pop %v941
    %v943 = vmul.f32 %v941, %v942
    %v944 = vsub.f32 1.0, %v943
    %v945 = vmul.f32 %v942, %v944
    %v946 = vadd.f32 %v942, %v945
    %vm947 = vweird.f32 %v941
    %vm948 = vweird.f32 %v942
    %vm949 = vmor %vm947, %vm948
    %v950 = vsel %vm949, %v942, %v946
    %v951 = vand.u32 2147483647, %v941
    %vm952 = vcmp.eq.f32.partialorder %v951, 8.507059e+37
    %v953 = vand.u32 %v941, 2147483648
    %v954 = vor.u32 1.1754944e-38, %v953
    %v955 = vsel %vm952, %v954, %v950
    %v956 = vmul.f32 1.0, %v955
    %v957 = vmul.f32 %v936, %v835
    %v958 = vmul.f32 %v917, %v937
    %v959 = vadd.f32 %v957, %v958
    %v960 = vtanh.pop %v959
    %v961 = vmul.f32 %v956, %v960
    %v962 = vld [vmem:[#allocation2 + $0x80] sm:$0xff]
    %v963 = vld [vmem:[#allocation2 + $0x88] sm:$0xff]
    %v964 = vld [vmem:[#allocation2 + $0x90] sm:$0xff]
    %v965 = vld [vmem:[#allocation2 + $0x98] sm:$0xff]
    %v966 = vpack.c.bf16 %v961, %v961
    %967 = vmatpush.bf16.msra.mxu0 %v435
    %968 = vmatpush.bf16.msra.mxu0 %v431
    %969 = vmatpush.bf16.msra.mxu0 %v427
    %970 = vmatpush.bf16.msra.mxu0 %v423
    %971 = vmatpush.bf16.msra.mxu0 %v419
    %972 = vmatpush.bf16.msra.mxu0 %v415
    %973 = vmatpush.bf16.msra.mxu0 %v411
    %974 = vmatpush.bf16.msra.mxu0 %v407
    %975 = vmatmul.bf16.gmra.mxu0 %v966
    %v976 = vpop.f32.mrf.mxu0
    %v977 = vadd.f32 0.0, %v976
    %v978 = vpop.f32.mrf.mxu0
    %979 = vdwg.mxu0
    %980 = vmatpush.bf16.msra.mxu0 %v436
    %981 = vmatpush.bf16.msra.mxu0 %v432
    %982 = vmatpush.bf16.msra.mxu0 %v428
    %983 = vmatpush.bf16.msra.mxu0 %v424
    %984 = vmatpush.bf16.msra.mxu0 %v420
    %985 = vmatpush.bf16.msra.mxu0 %v416
    %986 = vmatpush.bf16.msra.mxu0 %v412
    %987 = vmatpush.bf16.msra.mxu0 %v408
    %988 = vmatmul.bf16.gmra.mxu0 %v966
    %v989 = vpop.f32.mrf.mxu0
    %v990 = vadd.f32 0.0, %v989
    %v991 = vpop.f32.mrf.mxu0
    %992 = vdwg.mxu0
    %993 = vmatpush.bf16.msra.mxu0 %v437
    %994 = vmatpush.bf16.msra.mxu0 %v433
    %995 = vmatpush.bf16.msra.mxu0 %v429
    %996 = vmatpush.bf16.msra.mxu0 %v425
    %997 = vmatpush.bf16.msra.mxu0 %v421
    %998 = vmatpush.bf16.msra.mxu0 %v417
    %999 = vmatpush.bf16.msra.mxu0 %v413
    %1000 = vmatpush.bf16.msra.mxu0 %v409
    %1001 = vmatmul.bf16.gmra.mxu0 %v966
    %v1002 = vpop.f32.mrf.mxu0
    %v1003 = vadd.f32 0.0, %v1002
    %v1004 = vpop.f32.mrf.mxu0
    %1005 = vdwg.mxu0
    %1006 = vmatpush.bf16.msra.mxu0 %v438
    %1007 = vmatpush.bf16.msra.mxu0 %v434
    %1008 = vmatpush.bf16.msra.mxu0 %v430
    %1009 = vmatpush.bf16.msra.mxu0 %v426
    %1010 = vmatpush.bf16.msra.mxu0 %v422
    %1011 = vmatpush.bf16.msra.mxu0 %v418
    %1012 = vmatpush.bf16.msra.mxu0 %v414
    %1013 = vmatpush.bf16.msra.mxu0 %v410
    %1014 = vmatmul.bf16.gmra.mxu0 %v966
    %v1015 = vpop.f32.mrf.mxu0
    %v1016 = vadd.f32 0.0, %v1015
    %v1017 = vpop.f32.mrf.mxu0
    %1018 = vdwg.mxu0
    %v1019 = vadd.f32 %v962, %v977
    %v1020 = vadd.f32 %v963, %v990
    %v1021 = vadd.f32 %v964, %v1003
    %v1022 = vadd.f32 %v965, %v1016
    %v1023 = vxor.u32 %v1019, 2147483648
    %v1024 = vmul.f32 %v1023, 1.442695
    %v1025 = vpow.pop %v1024
    %v1026 = vadd.f32 %v1025, 1.0
    %v1027 = vrcp.pop %v1026
    %v1028 = vmul.f32 %v1026, %v1027
    %v1029 = vsub.f32 1.0, %v1028
    %v1030 = vmul.f32 %v1027, %v1029
    %v1031 = vadd.f32 %v1027, %v1030
    %vm1032 = vweird.f32 %v1026
    %vm1033 = vweird.f32 %v1027
    %vm1034 = vmor %vm1032, %vm1033
    %v1035 = vsel %vm1034, %v1027, %v1031
    %v1036 = vand.u32 2147483647, %v1026
    %vm1037 = vcmp.eq.f32.partialorder %v1036, 8.507059e+37
    %v1038 = vand.u32 %v1026, 2147483648
    %v1039 = vor.u32 1.1754944e-38, %v1038
    %v1040 = vsel %vm1037, %v1039, %v1035
    %v1041 = vmul.f32 1.0, %v1040
    %v1042 = vxor.u32 %v1020, 2147483648
    %v1043 = vmul.f32 %v1042, 1.442695
    %v1044 = vpow.pop %v1043
    %v1045 = vadd.f32 %v1044, 1.0
    %v1046 = vrcp.pop %v1045
    %v1047 = vmul.f32 %v1045, %v1046
    %v1048 = vsub.f32 1.0, %v1047
    %v1049 = vmul.f32 %v1046, %v1048
    %v1050 = vadd.f32 %v1046, %v1049
    %vm1051 = vweird.f32 %v1045
    %vm1052 = vweird.f32 %v1046
    %vm1053 = vmor %vm1051, %vm1052
    %v1054 = vsel %vm1053, %v1046, %v1050
    %v1055 = vand.u32 2147483647, %v1045
    %vm1056 = vcmp.eq.f32.partialorder %v1055, 8.507059e+37
    %v1057 = vand.u32 %v1045, 2147483648
    %v1058 = vor.u32 1.1754944e-38, %v1057
    %v1059 = vsel %vm1056, %v1058, %v1054
    %v1060 = vmul.f32 1.0, %v1059
    %v1061 = vtanh.pop %v1021
    %v1062 = vxor.u32 %v1022, 2147483648
    %v1063 = vmul.f32 %v1062, 1.442695
    %v1064 = vpow.pop %v1063
    %v1065 = vadd.f32 %v1064, 1.0
    %v1066 = vrcp.pop %v1065
    %v1067 = vmul.f32 %v1065, %v1066
    %v1068 = vsub.f32 1.0, %v1067
    %v1069 = vmul.f32 %v1066, %v1068
    %v1070 = vadd.f32 %v1066, %v1069
    %vm1071 = vweird.f32 %v1065
    %vm1072 = vweird.f32 %v1066
    %vm1073 = vmor %vm1071, %vm1072
    %v1074 = vsel %vm1073, %v1066, %v1070
    %v1075 = vand.u32 2147483647, %v1065
    %vm1076 = vcmp.eq.f32.partialorder %v1075, 8.507059e+37
    %v1077 = vand.u32 %v1065, 2147483648
    %v1078 = vor.u32 1.1754944e-38, %v1077
    %v1079 = vsel %vm1076, %v1078, %v1074
    %v1080 = vmul.f32 1.0, %v1079
    %v1081 = vmul.f32 %v1060, %v959
    %v1082 = vmul.f32 %v1041, %v1061
    %v1083 = vadd.f32 %v1081, %v1082
    %v1084 = vtanh.pop %v1083
    %v1085 = vmul.f32 %v1080, %v1084
    %v1086 = vld [vmem:[#allocation2 + $0xa0] sm:$0xff]
    %v1087 = vld [vmem:[#allocation2 + $0xa8] sm:$0xff]
    %v1088 = vld [vmem:[#allocation2 + $0xb0] sm:$0xff]
    %v1089 = vld [vmem:[#allocation2 + $0xb8] sm:$0xff]
    %v1090 = vpack.c.bf16 %v1085, %v1085
    %1091 = vmatpush.bf16.msra.mxu0 %v435
    %1092 = vmatpush.bf16.msra.mxu0 %v431
    %1093 = vmatpush.bf16.msra.mxu0 %v427
    %1094 = vmatpush.bf16.msra.mxu0 %v423
    %1095 = vmatpush.bf16.msra.mxu0 %v419
    %1096 = vmatpush.bf16.msra.mxu0 %v415
    %1097 = vmatpush.bf16.msra.mxu0 %v411
    %1098 = vmatpush.bf16.msra.mxu0 %v407
    %1099 = vmatmul.bf16.gmra.mxu0 %v1090
    %v1100 = vpop.f32.mrf.mxu0
    %v1101 = vadd.f32 0.0, %v1100
    %v1102 = vpop.f32.mrf.mxu0
    %1103 = vdwg.mxu0
    %1104 = vmatpush.bf16.msra.mxu0 %v436
    %1105 = vmatpush.bf16.msra.mxu0 %v432
    %1106 = vmatpush.bf16.msra.mxu0 %v428
    %1107 = vmatpush.bf16.msra.mxu0 %v424
    %1108 = vmatpush.bf16.msra.mxu0 %v420
    %1109 = vmatpush.bf16.msra.mxu0 %v416
    %1110 = vmatpush.bf16.msra.mxu0 %v412
    %1111 = vmatpush.bf16.msra.mxu0 %v408
    %1112 = vmatmul.bf16.gmra.mxu0 %v1090
    %v1113 = vpop.f32.mrf.mxu0
    %v1114 = vadd.f32 0.0, %v1113
    %v1115 = vpop.f32.mrf.mxu0
    %1116 = vdwg.mxu0
    %1117 = vmatpush.bf16.msra.mxu0 %v437
    %1118 = vmatpush.bf16.msra.mxu0 %v433
    %1119 = vmatpush.bf16.msra.mxu0 %v429
    %1120 = vmatpush.bf16.msra.mxu0 %v425
    %1121 = vmatpush.bf16.msra.mxu0 %v421
    %1122 = vmatpush.bf16.msra.mxu0 %v417
    %1123 = vmatpush.bf16.msra.mxu0 %v413
    %1124 = vmatpush.bf16.msra.mxu0 %v409
    %1125 = vmatmul.bf16.gmra.mxu0 %v1090
    %v1126 = vpop.f32.mrf.mxu0
    %v1127 = vadd.f32 0.0, %v1126
    %v1128 = vpop.f32.mrf.mxu0
    %1129 = vdwg.mxu0
    %1130 = vmatpush.bf16.msra.mxu0 %v438
    %1131 = vmatpush.bf16.msra.mxu0 %v434
    %1132 = vmatpush.bf16.msra.mxu0 %v430
    %1133 = vmatpush.bf16.msra.mxu0 %v426
    %1134 = vmatpush.bf16.msra.mxu0 %v422
    %1135 = vmatpush.bf16.msra.mxu0 %v418
    %1136 = vmatpush.bf16.msra.mxu0 %v414
    %1137 = vmatpush.bf16.msra.mxu0 %v410
    %1138 = vmatmul.bf16.gmra.mxu0 %v1090
    %v1139 = vpop.f32.mrf.mxu0
    %v1140 = vadd.f32 0.0, %v1139
    %v1141 = vpop.f32.mrf.mxu0
    %1142 = vdwg.mxu0
    %v1143 = vadd.f32 %v1086, %v1101
    %v1144 = vadd.f32 %v1087, %v1114
    %v1145 = vadd.f32 %v1088, %v1127
    %v1146 = vadd.f32 %v1089, %v1140
    %v1147 = vxor.u32 %v1143, 2147483648
    %v1148 = vmul.f32 %v1147, 1.442695
    %v1149 = vpow.pop %v1148
    %v1150 = vadd.f32 %v1149, 1.0
    %v1151 = vrcp.pop %v1150
    %v1152 = vmul.f32 %v1150, %v1151
    %v1153 = vsub.f32 1.0, %v1152
    %v1154 = vmul.f32 %v1151, %v1153
    %v1155 = vadd.f32 %v1151, %v1154
    %vm1156 = vweird.f32 %v1150
    %vm1157 = vweird.f32 %v1151
    %vm1158 = vmor %vm1156, %vm1157
    %v1159 = vsel %vm1158, %v1151, %v1155
    %v1160 = vand.u32 2147483647, %v1150
    %vm1161 = vcmp.eq.f32.partialorder %v1160, 8.507059e+37
    %v1162 = vand.u32 %v1150, 2147483648
    %v1163 = vor.u32 1.1754944e-38, %v1162
    %v1164 = vsel %vm1161, %v1163, %v1159
    %v1165 = vmul.f32 1.0, %v1164
    %v1166 = vxor.u32 %v1144, 2147483648
    %v1167 = vmul.f32 %v1166, 1.442695
    %v1168 = vpow.pop %v1167
    %v1169 = vadd.f32 %v1168, 1.0
    %v1170 = vrcp.pop %v1169
    %v1171 = vmul.f32 %v1169, %v1170
    %v1172 = vsub.f32 1.0, %v1171
    %v1173 = vmul.f32 %v1170, %v1172
    %v1174 = vadd.f32 %v1170, %v1173
    %vm1175 = vweird.f32 %v1169
    %vm1176 = vweird.f32 %v1170
    %vm1177 = vmor %vm1175, %vm1176
    %v1178 = vsel %vm1177, %v1170, %v1174
    %v1179 = vand.u32 2147483647, %v1169
    %vm1180 = vcmp.eq.f32.partialorder %v1179, 8.507059e+37
    %v1181 = vand.u32 %v1169, 2147483648
    %v1182 = vor.u32 1.1754944e-38, %v1181
    %v1183 = vsel %vm1180, %v1182, %v1178
    %v1184 = vmul.f32 1.0, %v1183
    %v1185 = vtanh.pop %v1145
    %v1186 = vxor.u32 %v1146, 2147483648
    %v1187 = vmul.f32 %v1186, 1.442695
    %v1188 = vpow.pop %v1187
    %v1189 = vadd.f32 %v1188, 1.0
    %v1190 = vrcp.pop %v1189
    %v1191 = vmul.f32 %v1189, %v1190
    %v1192 = vsub.f32 1.0, %v1191
    %v1193 = vmul.f32 %v1190, %v1192
    %v1194 = vadd.f32 %v1190, %v1193
    %vm1195 = vweird.f32 %v1189
    %vm1196 = vweird.f32 %v1190
    %vm1197 = vmor %vm1195, %vm1196
    %v1198 = vsel %vm1197, %v1190, %v1194
    %v1199 = vand.u32 2147483647, %v1189
    %vm1200 = vcmp.eq.f32.partialorder %v1199, 8.507059e+37
    %v1201 = vand.u32 %v1189, 2147483648
    %v1202 = vor.u32 1.1754944e-38, %v1201
    %v1203 = vsel %vm1200, %v1202, %v1198
    %v1204 = vmul.f32 1.0, %v1203
    %v1205 = vmul.f32 %v1184, %v1083
    %v1206 = vmul.f32 %v1165, %v1185
    %v1207 = vadd.f32 %v1205, %v1206
    %v1208 = vtanh.pop %v1207
    %v1209 = vmul.f32 %v1204, %v1208
    %v1210 = vld [vmem:[#allocation2 + $0xc0] sm:$0xff]
    %v1211 = vld [vmem:[#allocation2 + $0xc8] sm:$0xff]
    %v1212 = vld [vmem:[#allocation2 + $0xd0] sm:$0xff]
    %v1213 = vld [vmem:[#allocation2 + $0xd8] sm:$0xff]
    %v1214 = vpack.c.bf16 %v1209, %v1209
    %1215 = vmatpush.bf16.msra.mxu0 %v435
    %1216 = vmatpush.bf16.msra.mxu0 %v431
    %1217 = vmatpush.bf16.msra.mxu0 %v427
    %1218 = vmatpush.bf16.msra.mxu0 %v423
    %1219 = vmatpush.bf16.msra.mxu0 %v419
    %1220 = vmatpush.bf16.msra.mxu0 %v415
    %1221 = vmatpush.bf16.msra.mxu0 %v411
    %1222 = vmatpush.bf16.msra.mxu0 %v407
    %1223 = vmatmul.bf16.gmra.mxu0 %v1214
    %v1224 = vpop.f32.mrf.mxu0
    %v1225 = vadd.f32 0.0, %v1224
    %v1226 = vpop.f32.mrf.mxu0
    %1227 = vdwg.mxu0
    %1228 = vmatpush.bf16.msra.mxu0 %v436
    %1229 = vmatpush.bf16.msra.mxu0 %v432
    %1230 = vmatpush.bf16.msra.mxu0 %v428
    %1231 = vmatpush.bf16.msra.mxu0 %v424
    %1232 = vmatpush.bf16.msra.mxu0 %v420
    %1233 = vmatpush.bf16.msra.mxu0 %v416
    %1234 = vmatpush.bf16.msra.mxu0 %v412
    %1235 = vmatpush.bf16.msra.mxu0 %v408
    %1236 = vmatmul.bf16.gmra.mxu0 %v1214
    %v1237 = vpop.f32.mrf.mxu0
    %v1238 = vadd.f32 0.0, %v1237
    %v1239 = vpop.f32.mrf.mxu0
    %1240 = vdwg.mxu0
    %1241 = vmatpush.bf16.msra.mxu0 %v437
    %1242 = vmatpush.bf16.msra.mxu0 %v433
    %1243 = vmatpush.bf16.msra.mxu0 %v429
    %1244 = vmatpush.bf16.msra.mxu0 %v425
    %1245 = vmatpush.bf16.msra.mxu0 %v421
    %1246 = vmatpush.bf16.msra.mxu0 %v417
    %1247 = vmatpush.bf16.msra.mxu0 %v413
    %1248 = vmatpush.bf16.msra.mxu0 %v409
    %1249 = vmatmul.bf16.gmra.mxu0 %v1214
    %v1250 = vpop.f32.mrf.mxu0
    %v1251 = vadd.f32 0.0, %v1250
    %v1252 = vpop.f32.mrf.mxu0
    %1253 = vdwg.mxu0
    %1254 = vmatpush.bf16.msra.mxu0 %v438
    %1255 = vmatpush.bf16.msra.mxu0 %v434
    %1256 = vmatpush.bf16.msra.mxu0 %v430
    %1257 = vmatpush.bf16.msra.mxu0 %v426
    %1258 = vmatpush.bf16.msra.mxu0 %v422
    %1259 = vmatpush.bf16.msra.mxu0 %v418
    %1260 = vmatpush.bf16.msra.mxu0 %v414
    %1261 = vmatpush.bf16.msra.mxu0 %v410
    %1262 = vmatmul.bf16.gmra.mxu0 %v1214
    %v1263 = vpop.f32.mrf.mxu0
    %v1264 = vadd.f32 0.0, %v1263
    %v1265 = vpop.f32.mrf.mxu0
    %1266 = vdwg.mxu0
    %v1267 = vadd.f32 %v1210, %v1225
    %v1268 = vadd.f32 %v1211, %v1238
    %v1269 = vadd.f32 %v1212, %v1251
    %v1270 = vadd.f32 %v1213, %v1264
    %v1271 = vxor.u32 %v1267, 2147483648
    %v1272 = vmul.f32 %v1271, 1.442695
    %v1273 = vpow.pop %v1272
    %v1274 = vadd.f32 %v1273, 1.0
    %v1275 = vrcp.pop %v1274
    %v1276 = vmul.f32 %v1274, %v1275
    %v1277 = vsub.f32 1.0, %v1276
    %v1278 = vmul.f32 %v1275, %v1277
    %v1279 = vadd.f32 %v1275, %v1278
    %vm1280 = vweird.f32 %v1274
    %vm1281 = vweird.f32 %v1275
    %vm1282 = vmor %vm1280, %vm1281
    %v1283 = vsel %vm1282, %v1275, %v1279
    %v1284 = vand.u32 2147483647, %v1274
    %vm1285 = vcmp.eq.f32.partialorder %v1284, 8.507059e+37
    %v1286 = vand.u32 %v1274, 2147483648
    %v1287 = vor.u32 1.1754944e-38, %v1286
    %v1288 = vsel %vm1285, %v1287, %v1283
    %v1289 = vmul.f32 1.0, %v1288
    %v1290 = vxor.u32 %v1268, 2147483648
    %v1291 = vmul.f32 %v1290, 1.442695
    %v1292 = vpow.pop %v1291
    %v1293 = vadd.f32 %v1292, 1.0
    %v1294 = vrcp.pop %v1293
    %v1295 = vmul.f32 %v1293, %v1294
    %v1296 = vsub.f32 1.0, %v1295
    %v1297 = vmul.f32 %v1294, %v1296
    %v1298 = vadd.f32 %v1294, %v1297
    %vm1299 = vweird.f32 %v1293
    %vm1300 = vweird.f32 %v1294
    %vm1301 = vmor %vm1299, %vm1300
    %v1302 = vsel %vm1301, %v1294, %v1298
    %v1303 = vand.u32 2147483647, %v1293
    %vm1304 = vcmp.eq.f32.partialorder %v1303, 8.507059e+37
    %v1305 = vand.u32 %v1293, 2147483648
    %v1306 = vor.u32 1.1754944e-38, %v1305
    %v1307 = vsel %vm1304, %v1306, %v1302
    %v1308 = vmul.f32 1.0, %v1307
    %v1309 = vtanh.pop %v1269
    %v1310 = vxor.u32 %v1270, 2147483648
    %v1311 = vmul.f32 %v1310, 1.442695
    %v1312 = vpow.pop %v1311
    %v1313 = vadd.f32 %v1312, 1.0
    %v1314 = vrcp.pop %v1313
    %v1315 = vmul.f32 %v1313, %v1314
    %v1316 = vsub.f32 1.0, %v1315
    %v1317 = vmul.f32 %v1314, %v1316
    %v1318 = vadd.f32 %v1314, %v1317
    %vm1319 = vweird.f32 %v1313
    %vm1320 = vweird.f32 %v1314
    %vm1321 = vmor %vm1319, %vm1320
    %v1322 = vsel %vm1321, %v1314, %v1318
    %v1323 = vand.u32 2147483647, %v1313
    %vm1324 = vcmp.eq.f32.partialorder %v1323, 8.507059e+37
    %v1325 = vand.u32 %v1313, 2147483648
    %v1326 = vor.u32 1.1754944e-38, %v1325
    %v1327 = vsel %vm1324, %v1326, %v1322
    %v1328 = vmul.f32 1.0, %v1327
    %v1329 = vmul.f32 %v1308, %v1207
    %v1330 = vmul.f32 %v1289, %v1309
    %v1331 = vadd.f32 %v1329, %v1330
    %v1332 = vtanh.pop %v1331
    %v1333 = vmul.f32 %v1328, %v1332
    %v1334 = vld [vmem:[#allocation2 + $0xe0] sm:$0xff]
    %v1335 = vld [vmem:[#allocation2 + $0xe8] sm:$0xff]
    %v1336 = vld [vmem:[#allocation2 + $0xf0] sm:$0xff]
    %v1337 = vld [vmem:[#allocation2 + $0xf8] sm:$0xff]
    %v1338 = vpack.c.bf16 %v1333, %v1333
    %1339 = vmatpush.bf16.msra.mxu0 %v435
    %1340 = vmatpush.bf16.msra.mxu0 %v431
    %1341 = vmatpush.bf16.msra.mxu0 %v427
    %1342 = vmatpush.bf16.msra.mxu0 %v423
    %1343 = vmatpush.bf16.msra.mxu0 %v419
    %1344 = vmatpush.bf16.msra.mxu0 %v415
    %1345 = vmatpush.bf16.msra.mxu0 %v411
    %1346 = vmatpush.bf16.msra.mxu0 %v407
    %1347 = vmatmul.bf16.gmra.mxu0 %v1338
    %v1348 = vpop.f32.mrf.mxu0
    %v1349 = vadd.f32 0.0, %v1348
    %v1350 = vpop.f32.mrf.mxu0
    %1351 = vdwg.mxu0
    %1352 = vmatpush.bf16.msra.mxu0 %v436
    %1353 = vmatpush.bf16.msra.mxu0 %v432
    %1354 = vmatpush.bf16.msra.mxu0 %v428
    %1355 = vmatpush.bf16.msra.mxu0 %v424
    %1356 = vmatpush.bf16.msra.mxu0 %v420
    %1357 = vmatpush.bf16.msra.mxu0 %v416
    %1358 = vmatpush.bf16.msra.mxu0 %v412
    %1359 = vmatpush.bf16.msra.mxu0 %v408
    %1360 = vmatmul.bf16.gmra.mxu0 %v1338
    %v1361 = vpop.f32.mrf.mxu0
    %v1362 = vadd.f32 0.0, %v1361
    %v1363 = vpop.f32.mrf.mxu0
    %1364 = vdwg.mxu0
    %1365 = vmatpush.bf16.msra.mxu0 %v437
    %1366 = vmatpush.bf16.msra.mxu0 %v433
    %1367 = vmatpush.bf16.msra.mxu0 %v429
    %1368 = vmatpush.bf16.msra.mxu0 %v425
    %1369 = vmatpush.bf16.msra.mxu0 %v421
    %1370 = vmatpush.bf16.msra.mxu0 %v417
    %1371 = vmatpush.bf16.msra.mxu0 %v413
    %1372 = vmatpush.bf16.msra.mxu0 %v409
    %1373 = vmatmul.bf16.gmra.mxu0 %v1338
    %v1374 = vpop.f32.mrf.mxu0
    %v1375 = vadd.f32 0.0, %v1374
    %v1376 = vpop.f32.mrf.mxu0
    %1377 = vdwg.mxu0
    %1378 = vmatpush.bf16.msra.mxu0 %v438
    %1379 = vmatpush.bf16.msra.mxu0 %v434
    %1380 = vmatpush.bf16.msra.mxu0 %v430
    %1381 = vmatpush.bf16.msra.mxu0 %v426
    %1382 = vmatpush.bf16.msra.mxu0 %v422
    %1383 = vmatpush.bf16.msra.mxu0 %v418
    %1384 = vmatpush.bf16.msra.mxu0 %v414
    %1385 = vmatpush.bf16.msra.mxu0 %v410
    %1386 = vmatmul.bf16.gmra.mxu0 %v1338
    %v1387 = vpop.f32.mrf.mxu0
    %v1388 = vadd.f32 0.0, %v1387
    %v1389 = vpop.f32.mrf.mxu0
    %1390 = vdwg.mxu0
    %v1391 = vadd.f32 %v1334, %v1349
    %v1392 = vadd.f32 %v1335, %v1362
    %v1393 = vadd.f32 %v1336, %v1375
    %v1394 = vadd.f32 %v1337, %v1388
    %v1395 = vxor.u32 %v1391, 2147483648
    %v1396 = vmul.f32 %v1395, 1.442695
    %v1397 = vpow.pop %v1396
    %v1398 = vadd.f32 %v1397, 1.0
    %v1399 = vrcp.pop %v1398
    %v1400 = vmul.f32 %v1398, %v1399
    %v1401 = vsub.f32 1.0, %v1400
    %v1402 = vmul.f32 %v1399, %v1401
    %v1403 = vadd.f32 %v1399, %v1402
    %vm1404 = vweird.f32 %v1398
    %vm1405 = vweird.f32 %v1399
    %vm1406 = vmor %vm1404, %vm1405
    %v1407 = vsel %vm1406, %v1399, %v1403
    %v1408 = vand.u32 2147483647, %v1398
    %vm1409 = vcmp.eq.f32.partialorder %v1408, 8.507059e+37
    %v1410 = vand.u32 %v1398, 2147483648
    %v1411 = vor.u32 1.1754944e-38, %v1410
    %v1412 = vsel %vm1409, %v1411, %v1407
    %v1413 = vmul.f32 1.0, %v1412
    %v1414 = vxor.u32 %v1392, 2147483648
    %v1415 = vmul.f32 %v1414, 1.442695
    %v1416 = vpow.pop %v1415
    %v1417 = vadd.f32 %v1416, 1.0
    %v1418 = vrcp.pop %v1417
    %v1419 = vmul.f32 %v1417, %v1418
    %v1420 = vsub.f32 1.0, %v1419
    %v1421 = vmul.f32 %v1418, %v1420
    %v1422 = vadd.f32 %v1418, %v1421
    %vm1423 = vweird.f32 %v1417
    %vm1424 = vweird.f32 %v1418
    %vm1425 = vmor %vm1423, %vm1424
    %v1426 = vsel %vm1425, %v1418, %v1422
    %v1427 = vand.u32 2147483647, %v1417
    %vm1428 = vcmp.eq.f32.partialorder %v1427, 8.507059e+37
    %v1429 = vand.u32 %v1417, 2147483648
    %v1430 = vor.u32 1.1754944e-38, %v1429
    %v1431 = vsel %vm1428, %v1430, %v1426
    %v1432 = vmul.f32 1.0, %v1431
    %v1433 = vtanh.pop %v1393
    %v1434 = vxor.u32 %v1394, 2147483648
    %v1435 = vmul.f32 %v1434, 1.442695
    %v1436 = vpow.pop %v1435
    %v1437 = vadd.f32 %v1436, 1.0
    %v1438 = vrcp.pop %v1437
    %v1439 = vmul.f32 %v1437, %v1438
    %v1440 = vsub.f32 1.0, %v1439
    %v1441 = vmul.f32 %v1438, %v1440
    %v1442 = vadd.f32 %v1438, %v1441
    %vm1443 = vweird.f32 %v1437
    %vm1444 = vweird.f32 %v1438
    %vm1445 = vmor %vm1443, %vm1444
    %v1446 = vsel %vm1445, %v1438, %v1442
    %v1447 = vand.u32 2147483647, %v1437
    %vm1448 = vcmp.eq.f32.partialorder %v1447, 8.507059e+37
    %v1449 = vand.u32 %v1437, 2147483648
    %v1450 = vor.u32 1.1754944e-38, %v1449
    %v1451 = vsel %vm1448, %v1450, %v1446
    %v1452 = vmul.f32 1.0, %v1451
    %v1453 = vmul.f32 %v1432, %v1331
    %v1454 = vmul.f32 %v1413, %v1433
    %v1455 = vadd.f32 %v1453, %v1454
    %v1456 = vtanh.pop %v1455
    %v1457 = vmul.f32 %v1452, %v1456
    %v1458 = vld [vmem:[%s1] sm:$0xf]
    %v1459 = vld [vmem:[%s5] sm:$0xff]
    %v1460 = vld [vmem:[%s5 + $0x8] sm:$0xff]
    %v1461 = vld [vmem:[%s5 + $0x10] sm:$0xff]
    %v1462 = vld [vmem:[%s5 + $0x18] sm:$0xff]
    %v1463 = vld [vmem:[%s6] sm:$0xf]
    %v1465 = vperm.slane %v1463, 0
    %v1466 = vperm.slane %v1463, 1
    %v1467 = vperm.slane %v1463, 2
    %v1468 = vperm.slane %v1463, 3
    %v1477 = vunpack.c.l.b16 %v1459
    %v1478 = vunpack.c.h.b16 %v1459
    %v1479 = vunpack.c.l.b16 %v1460
    %v1480 = vunpack.c.h.b16 %v1460
    %v1481 = vunpack.c.l.b16 %v1461
    %v1482 = vunpack.c.h.b16 %v1461
    %v1483 = vunpack.c.l.b16 %v1462
    %v1484 = vunpack.c.h.b16 %v1462
    %v1485 = vpack.c.b16 %v1481, %v1477
    %v1486 = vpack.c.b16 %v1482, %v1478
    %v1487 = vpack.c.b16 %v1483, %v1479
    %v1488 = vpack.c.b16 %v1484, %v1480
    %v1494 = vsel %vm114, %v1458, 0
    %1496 = vmatpush.bf16.msra.mxu0 0
    %1497 = vmatpush.bf16.msra.mxu0 0
    %1498 = vmatpush.bf16.msra.mxu0 0
    %1499 = vmatpush.bf16.msra.mxu0 0
    %1500 = vmatpush.bf16.msra.mxu0 0
    %1501 = vmatpush.bf16.msra.mxu0 0
    %1502 = vmatpush.bf16.msra.mxu0 0
    %1503 = vmatpush.bf16.msra.mxu0 %v1485
    %1504 = vmatmul.bf16.gmra.mxu0 %v1494
    %v1505 = vpop.f32.mrf.mxu0
    %v1506 = vadd.f32 %v1465, %v1505
    %v1507 = vpop.f32.mrf.mxu0
    %1508 = vdwg.mxu0
    %1509 = vmatpush.bf16.msra.mxu0 0
    %1510 = vmatpush.bf16.msra.mxu0 0
    %1511 = vmatpush.bf16.msra.mxu0 0
    %1512 = vmatpush.bf16.msra.mxu0 0
    %1513 = vmatpush.bf16.msra.mxu0 0
    %1514 = vmatpush.bf16.msra.mxu0 0
    %1515 = vmatpush.bf16.msra.mxu0 0
    %1516 = vmatpush.bf16.msra.mxu0 %v1486
    %1517 = vmatmul.bf16.gmra.mxu0 %v1494
    %v1518 = vpop.f32.mrf.mxu0
    %v1519 = vadd.f32 %v1466, %v1518
    %v1520 = vpop.f32.mrf.mxu0
    %1521 = vdwg.mxu0
    %1522 = vmatpush.bf16.msra.mxu0 0
    %1523 = vmatpush.bf16.msra.mxu0 0
    %1524 = vmatpush.bf16.msra.mxu0 0
    %1525 = vmatpush.bf16.msra.mxu0 0
    %1526 = vmatpush.bf16.msra.mxu0 0
    %1527 = vmatpush.bf16.msra.mxu0 0
    %1528 = vmatpush.bf16.msra.mxu0 0
    %1529 = vmatpush.bf16.msra.mxu0 %v1487
    %1530 = vmatmul.bf16.gmra.mxu0 %v1494
    %v1531 = vpop.f32.mrf.mxu0
    %v1532 = vadd.f32 %v1467, %v1531
    %v1533 = vpop.f32.mrf.mxu0
    %1534 = vdwg.mxu0
    %1535 = vmatpush.bf16.msra.mxu0 0
    %1536 = vmatpush.bf16.msra.mxu0 0
    %1537 = vmatpush.bf16.msra.mxu0 0
    %1538 = vmatpush.bf16.msra.mxu0 0
    %1539 = vmatpush.bf16.msra.mxu0 0
    %1540 = vmatpush.bf16.msra.mxu0 0
    %1541 = vmatpush.bf16.msra.mxu0 0
    %1542 = vmatpush.bf16.msra.mxu0 %v1488
    %1543 = vmatmul.bf16.gmra.mxu0 %v1494
    %v1544 = vpop.f32.mrf.mxu0
    %v1545 = vadd.f32 %v1468, %v1544
    %v1546 = vpop.f32.mrf.mxu0
    %1547 = vdwg.mxu0
    %v1548 = vxor.u32 %v1506, 2147483648
    %v1549 = vmul.f32 %v1548, 1.442695
    %v1550 = vpow.pop %v1549
    %v1551 = vadd.f32 %v1550, 1.0
    %v1552 = vrcp.pop %v1551
    %v1553 = vmul.f32 %v1551, %v1552
    %v1554 = vsub.f32 1.0, %v1553
    %v1555 = vmul.f32 %v1552, %v1554
    %v1556 = vadd.f32 %v1552, %v1555
    %vm1557 = vweird.f32 %v1551
    %vm1558 = vweird.f32 %v1552
    %vm1559 = vmor %vm1557, %vm1558
    %v1560 = vsel %vm1559, %v1552, %v1556
    %v1561 = vand.u32 2147483647, %v1551
    %vm1562 = vcmp.eq.f32.partialorder %v1561, 8.507059e+37
    %v1563 = vand.u32 %v1551, 2147483648
    %v1564 = vor.u32 1.1754944e-38, %v1563
    %v1565 = vsel %vm1562, %v1564, %v1560
    %v1566 = vmul.f32 1.0, %v1565
    %v1567 = vxor.u32 %v1519, 2147483648
    %v1568 = vmul.f32 %v1567, 1.442695
    %v1569 = vpow.pop %v1568
    %v1570 = vadd.f32 %v1569, 1.0
    %v1571 = vrcp.pop %v1570
    %v1572 = vmul.f32 %v1570, %v1571
    %v1573 = vsub.f32 1.0, %v1572
    %v1574 = vmul.f32 %v1571, %v1573
    %v1575 = vadd.f32 %v1571, %v1574
    %vm1576 = vweird.f32 %v1570
    %vm1577 = vweird.f32 %v1571
    %vm1578 = vmor %vm1576, %vm1577
    %v1579 = vsel %vm1578, %v1571, %v1575
    %v1580 = vand.u32 2147483647, %v1570
    %vm1581 = vcmp.eq.f32.partialorder %v1580, 8.507059e+37
    %v1582 = vand.u32 %v1570, 2147483648
    %v1583 = vor.u32 1.1754944e-38, %v1582
    %v1584 = vsel %vm1581, %v1583, %v1579
    %v1585 = vmul.f32 1.0, %v1584
    %v1586 = vtanh.pop %v1532
    %v1587 = vxor.u32 %v1545, 2147483648
    %v1588 = vmul.f32 %v1587, 1.442695
    %v1589 = vpow.pop %v1588
    %v1590 = vadd.f32 %v1589, 1.0
    %v1591 = vrcp.pop %v1590
    %v1592 = vmul.f32 %v1590, %v1591
    %v1593 = vsub.f32 1.0, %v1592
    %v1594 = vmul.f32 %v1591, %v1593
    %v1595 = vadd.f32 %v1591, %v1594
    %vm1596 = vweird.f32 %v1590
    %vm1597 = vweird.f32 %v1591
    %vm1598 = vmor %vm1596, %vm1597
    %v1599 = vsel %vm1598, %v1591, %v1595
    %v1600 = vand.u32 2147483647, %v1590
    %vm1601 = vcmp.eq.f32.partialorder %v1600, 8.507059e+37
    %v1602 = vand.u32 %v1590, 2147483648
    %v1603 = vor.u32 1.1754944e-38, %v1602
    %v1604 = vsel %vm1601, %v1603, %v1599
    %v1605 = vmul.f32 1.0, %v1604
    %v1606 = vmul.f32 %v1585, 0.0
    %v1607 = vmul.f32 %v1566, %v1586
    %v1608 = vadd.f32 %v1606, %v1607
    %v1609 = vtanh.pop %v1608
    %v1610 = vmul.f32 %v1605, %v1609
    %v1611 = vpack.c.bf16 %v1457, %v1457
    %v1612 = vld [vmem:[%s7] sm:$0xf]
    %v1613 = vld [vmem:[%s7 + $0x4] sm:$0xf]
    %v1614 = vld [vmem:[%s7 + $0x8] sm:$0xf]
    %v1615 = vld [vmem:[%s7 + $0xc] sm:$0xf]
    %v1616 = vld [vmem:[%s7 + $0x10] sm:$0xf]
    %v1617 = vld [vmem:[%s7 + $0x14] sm:$0xf]
    %v1618 = vld [vmem:[%s7 + $0x18] sm:$0xf]
    %v1619 = vld [vmem:[%s7 + $0x1c] sm:$0xf]
    %v1620 = vld [vmem:[%s7 + $0x20] sm:$0xf]
    %v1621 = vld [vmem:[%s7 + $0x24] sm:$0xf]
    %v1622 = vld [vmem:[%s7 + $0x28] sm:$0xf]
    %v1623 = vld [vmem:[%s7 + $0x2c] sm:$0xf]
    %v1624 = vld [vmem:[%s7 + $0x30] sm:$0xf]
    %v1625 = vld [vmem:[%s7 + $0x34] sm:$0xf]
    %v1626 = vld [vmem:[%s7 + $0x38] sm:$0xf]
    %v1627 = vld [vmem:[%s7 + $0x3c] sm:$0xf]
    %v1628 = vpack.c.bf16 %v1610, %v1610
    %v1629 = vld [vmem:[%s8] sm:$0xf]
    %v1630 = vld [vmem:[%s8 + $0x4] sm:$0xf]
    %v1631 = vld [vmem:[%s8 + $0x8] sm:$0xf]
    %v1632 = vld [vmem:[%s8 + $0xc] sm:$0xf]
    %v1633 = vld [vmem:[%s8 + $0x10] sm:$0xf]
    %v1634 = vld [vmem:[%s8 + $0x14] sm:$0xf]
    %v1635 = vld [vmem:[%s8 + $0x18] sm:$0xf]
    %v1636 = vld [vmem:[%s8 + $0x1c] sm:$0xf]
    %v1637 = vld [vmem:[%s8 + $0x20] sm:$0xf]
    %v1638 = vld [vmem:[%s8 + $0x24] sm:$0xf]
    %v1639 = vld [vmem:[%s8 + $0x28] sm:$0xf]
    %v1640 = vld [vmem:[%s8 + $0x2c] sm:$0xf]
    %v1641 = vld [vmem:[%s8 + $0x30] sm:$0xf]
    %v1642 = vld [vmem:[%s8 + $0x34] sm:$0xf]
    %v1643 = vld [vmem:[%s8 + $0x38] sm:$0xf]
    %v1644 = vld [vmem:[%s8 + $0x3c] sm:$0xf]
    %v1661 = vunpack.c.l.b16 %v1629
    %v1662 = vunpack.c.l.b16 %v1630
    %v1663 = vunpack.c.l.b16 %v1631
    %v1664 = vunpack.c.l.b16 %v1632
    %v1665 = vunpack.c.l.b16 %v1633
    %v1666 = vunpack.c.l.b16 %v1634
    %v1667 = vunpack.c.l.b16 %v1635
    %v1668 = vunpack.c.l.b16 %v1636
    %v1669 = vunpack.c.l.b16 %v1637
    %v1670 = vunpack.c.l.b16 %v1638
    %v1671 = vunpack.c.l.b16 %v1639
    %v1672 = vunpack.c.l.b16 %v1640
    %v1673 = vunpack.c.l.b16 %v1641
    %v1674 = vunpack.c.l.b16 %v1642
    %v1675 = vunpack.c.l.b16 %v1643
    %v1676 = vunpack.c.l.b16 %v1644
    %v1677 = vpack.c.b16 %v1662, %v1661
    %v1678 = vpack.c.b16 %v1664, %v1663
    %v1679 = vpack.c.b16 %v1666, %v1665
    %v1680 = vpack.c.b16 %v1668, %v1667
    %v1681 = vpack.c.b16 %v1670, %v1669
    %v1682 = vpack.c.b16 %v1672, %v1671
    %v1683 = vpack.c.b16 %v1674, %v1673
    %v1684 = vpack.c.b16 %v1676, %v1675
    %1693 = vmatpush.bf16.msra.mxu0 %v1684
    %1694 = vmatpush.bf16.msra.mxu0 %v1683
    %1695 = vmatpush.bf16.msra.mxu0 %v1682
    %1696 = vmatpush.bf16.msra.mxu0 %v1681
    %1697 = vmatpush.bf16.msra.mxu0 %v1680
    %1698 = vmatpush.bf16.msra.mxu0 %v1679
    %1699 = vmatpush.bf16.msra.mxu0 %v1678
    %1700 = vmatpush.bf16.msra.mxu0 %v1677
    %1701 = vmatmul.bf16.gmra.mxu0 %v1628
    %v1702 = vpop.f32.mrf.mxu0
    %v1703 = vadd.f32 0.0, %v1702
    %v1704 = vpop.f32.mrf.mxu0
    %1705 = vdwg.mxu0
    %v1722 = vunpack.c.l.b16 %v1612
    %v1723 = vunpack.c.l.b16 %v1613
    %v1724 = vunpack.c.l.b16 %v1614
    %v1725 = vunpack.c.l.b16 %v1615
    %v1726 = vunpack.c.l.b16 %v1616
    %v1727 = vunpack.c.l.b16 %v1617
    %v1728 = vunpack.c.l.b16 %v1618
    %v1729 = vunpack.c.l.b16 %v1619
    %v1730 = vunpack.c.l.b16 %v1620
    %v1731 = vunpack.c.l.b16 %v1621
    %v1732 = vunpack.c.l.b16 %v1622
    %v1733 = vunpack.c.l.b16 %v1623
    %v1734 = vunpack.c.l.b16 %v1624
    %v1735 = vunpack.c.l.b16 %v1625
    %v1736 = vunpack.c.l.b16 %v1626
    %v1737 = vunpack.c.l.b16 %v1627
    %v1738 = vpack.c.b16 %v1723, %v1722
    %v1739 = vpack.c.b16 %v1725, %v1724
    %v1740 = vpack.c.b16 %v1727, %v1726
    %v1741 = vpack.c.b16 %v1729, %v1728
    %v1742 = vpack.c.b16 %v1731, %v1730
    %v1743 = vpack.c.b16 %v1733, %v1732
    %v1744 = vpack.c.b16 %v1735, %v1734
    %v1745 = vpack.c.b16 %v1737, %v1736
    %1754 = vmatpush.bf16.msra.mxu0 %v1745
    %1755 = vmatpush.bf16.msra.mxu0 %v1744
    %1756 = vmatpush.bf16.msra.mxu0 %v1743
    %1757 = vmatpush.bf16.msra.mxu0 %v1742
    %1758 = vmatpush.bf16.msra.mxu0 %v1741
    %1759 = vmatpush.bf16.msra.mxu0 %v1740
    %1760 = vmatpush.bf16.msra.mxu0 %v1739
    %1761 = vmatpush.bf16.msra.mxu0 %v1738
    %1762 = vmatmul.bf16.gmra.mxu0 %v1611
    %v1763 = vpop.f32.mrf.mxu0
    %v1764 = vadd.f32 %v1703, %v1763
    %v1765 = vpop.f32.mrf.mxu0
    %1766 = vdwg.mxu0
    %v1767 = vld [vmem:[%s9] sm:$0x1]
    %v1769 = vperm.slane %v1767, 0
    %v1771 = vadd.f32 %v1764, %v1769
    %vm1772 = vcmask 15360
    %1773 = vst.msk [vmem:[%s10] sm:$0xff] %vm1772, %v1771
    // Predicated region
    $region46: #{lstm_model_forward.1} parent=1 // pred_check
      _
    $region47: #{lstm_model_forward.1} parent=1 // pred_check_branch
      %1775 = sbr.rel (0) target = $region49
    $region48: #{lstm_model_forward.1} parent=1 // pred_region
      _
    $region49: #{lstm_model_forward.1} parent=1 // pred_fallthru
      _
    // Predicated region
    $region50: #{lstm_model_forward.1} parent=1 // pred_check
      _
    $region51: #{lstm_model_forward.1} parent=1 // pred_check_branch
      %1777 = sbr.rel (0) target = $region53
    $region52: #{lstm_model_forward.1} parent=1 // pred_region
      _
    $region53: #{lstm_model_forward.1} parent=1 // pred_fallthru
      _
    %1778 = vsyncpa [#allocation4], 1

</llo_original>
